<compile_context>
chip_gen: v6e
topology: v6e:2x2x1
jax: 0.10.0
libtpu: 0.0.40
codegen_flags: <defaults>
</compile_context>

<pallas_src>
import jax
import jax.numpy as jnp
from jax import lax
from jax.experimental import pallas as pl

# ---- config (stand-in for the PyTorch `config` object) ----
VOCAB = 50
BERT_DIM = 32      # config.bert_dim (768 for real BERT; small synthetic here)
HIDDEN = 16        # config.hidden   (8*HIDDEN == 128 -> lane-dense gate matmuls)
NUM_CLASSES = 8    # config.num_classes
B, T = 2, 8        # batch, sequence length
# config.layers = 1; config.dropout -> identity at inference.

LANES = 128
# -------- packed parameter slab layout (row offsets) --------
R_WIH = 0                              # (D, 8H)   input-proj, cols [fwd i,f,o,g | bwd i,f,o,g]
R_WHH = R_WIH + BERT_DIM               # (H, 8H)   recurrent,  cols [whh_f | whh_b]
R_B = R_WHH + HIDDEN                   # (1, 8H)   combined b_ih + b_hh, both directions
R_LNG = R_B + 1                        # (1, D)    LayerNorm gamma
R_LNB = R_LNG + 1                      # (1, D)    LayerNorm beta
R_WFC = R_LNB + 1                      # (2H, C)   fc weight, rows [fwd H ; bwd H]
R_BFC = R_WFC + 2 * HIDDEN             # (1, C)
R_TRANS = R_BFC + 1                    # (C, C)    CRF transitions
R_START = R_TRANS + NUM_CLASSES        # (1, C)
R_END = R_START + 1                    # (1, C)
R_GOLD = R_END + 1                     # (1, B)    per-call gold trans/start/end score
SLAB_ROWS = ((R_GOLD + 1 + 7) // 8) * 8    # pad rows to multiple of 8


def _full_spec(shape):
    n = len(shape)
    return pl.BlockSpec(shape, lambda i, n=n: (0,) * n)


# ------------- single fused kernel: LN -> BiLSTM -> fc -> log_softmax -> CRF NLL -------------
def fused_ner_kernel(x_ref, slab_ref, ohm_ref, loss_ref):
    Tn, B2, D = x_ref.shape            # x is [fwd batch ; time-reversed batch] stacked: 2B rows
    Bn = B2 // 2
    H = HIDDEN
    C = NUM_CLASSES
    H3, H4 = 3 * H, 4 * H

    # ---- static slices out of the single packed parameter slab ----
    wih = slab_ref[R_WIH:R_WIH + D, :]            # (D, 8H)
    whh = slab_ref[R_WHH:R_WHH + H, :]            # (H, 8H)  cols[:4H]=fwd, [4H:]=bwd
    b_g = slab_ref[R_B:R_B + 1, :]                # (1, 8H)
    g_ln = slab_ref[R_LNG:R_LNG + 1, 0:D]         # (1, D)
    b_ln = slab_ref[R_LNB:R_LNB + 1, 0:D]         # (1, D)
    w_fc = slab_ref[R_WFC:R_WFC + 2 * H, 0:C]     # (2H, C)
    b_fc = slab_ref[R_BFC:R_BFC + 1, 0:C]         # (1, C)
    trans = slab_ref[R_TRANS:R_TRANS + C, 0:C]    # (C, C)  trans[from, to]
    start = slab_ref[R_START:R_START + 1, 0:C]    # (1, C)
    end = slab_ref[R_END:R_END + 1, 0:C]          # (1, C)
    gold_ts = slab_ref[R_GOLD:R_GOLD + 1, :]      # (1, 128), zeros beyond lane Bn

    # ---- 1. LayerNorm (BERT-stub output norm, eps=1e-12 per BERT convention) ----
    x = x_ref[...]                                               # (T, 2B, D)
    mu = jnp.mean(x, axis=-1, keepdims=True)
    var = jnp.mean((x - mu) ** 2, axis=-1, keepdims=True)
    xn = (x - mu) * lax.rsqrt(var + 1e-12) * g_ln + b_ln

    # ---- 2. BiLSTM: one lane-dense input projection, one MXU push per step ----
    # rows [0:B]  of xn hold x_t        -> use forward gate columns [0:4H]
    # rows [B:2B] of xn hold x_{T-1-t}  -> use backward gate columns [4H:8H]
    xw = jnp.dot(xn, wih, preferred_element_type=jnp.float32) + b_g       # (T, 2B, 8H)
    row_fwd3 = lax.broadcasted_iota(jnp.int32, (1, B2, 1), 1) < Bn
    xw_sel = jnp.where(row_fwd3, xw[..., :H4], xw[..., H4:])              # (T, 2B, 4H) i|f|o|g
    row_fwd2 = lax.broadcasted_iota(jnp.int32, (B2, 1), 0) < Bn

    h = jnp.zeros((B2, H), jnp.float32)        # rows [0:B]=fwd hidden, [B:2B]=bwd hidden
    c = jnp.zeros((B2, H), jnp.float32)
    hs = []
    for t in range(Tn):                        # static unroll; all state stays in vregs
        recur = jnp.dot(h, whh, preferred_element_type=jnp.float32)       # (2B, 8H)
        gates = xw_sel[t] + jnp.where(row_fwd2, recur[:, :H4], recur[:, H4:])   # (2B, 4H)
        s = jax.nn.sigmoid(gates[:, :H3])      # i,f,o in one contiguous sigmoid slice
        g = jnp.tanh(gates[:, H3:])            # g in one tanh slice
        c = s[:, H:2 * H] * c + s[:, :H] * g
        h = s[:, 2 * H:H3] * jnp.tanh(c)
        hs.append(h)

    # gather bidirectional outputs (time reversal done by Python-list reordering: free)
    outf = jnp.stack([hs[t][:Bn] for t in range(Tn)], axis=0)             # (T, B, H)
    outb = jnp.stack([hs[Tn - 1 - t][Bn:] for t in range(Tn)], axis=0)    # (T, B, H)
    out = jnp.concatenate([outf, outb], axis=-1)                          # (T, B, 2H)

    # ---- 3. fc + log_softmax (dropout = identity at inference) ----
    y = jnp.dot(out, w_fc, preferred_element_type=jnp.float32) + b_fc     # (T, B, C)
    my = jnp.max(y, axis=-1, keepdims=True)
    logp = (y - my) - jnp.log(jnp.sum(jnp.exp(y - my), axis=-1, keepdims=True))

    # ---- 4. CRF negative log-likelihood (mean over batch) ----
    ohm = ohm_ref[...]                                   # (T, B, C) one-hot(tags) * mask
    mask = jnp.sum(ohm, axis=-1, keepdims=True)          # (T, B, 1)  (one-hot sums to mask)
    expT = jnp.exp(trans)                                # hoisted: matmul-logsumexp form

    alpha = logp[0] + start                              # (B, C); assumes mask[0] == 1
    for t in range(1, Tn):
        mxa = jnp.max(alpha, axis=-1, keepdims=True)
        new_alpha = logp[t] + mxa + jnp.log(
            jnp.dot(jnp.exp(alpha - mxa), expT, preferred_element_type=jnp.float32))
        alpha = jnp.where(mask[t] > 0.0, new_alpha, alpha)
    alpha = alpha + end
    mxa = jnp.max(alpha, axis=-1, keepdims=True)
    norm = mxa + jnp.log(jnp.sum(jnp.exp(alpha - mxa), axis=-1, keepdims=True))   # (B, 1)

    # gold = masked emission score (single vectorized reduce) + hoisted trans/start/end score
    gold = jnp.sum(logp * ohm) + jnp.sum(gold_ts)
    loss_ref[...] = ((jnp.sum(norm) - gold) / Bn).reshape(1, 1)


# ---------------- parameter packing ----------------
def pack_param_slab(p):
    def pad_l(a):
        return jnp.pad(a, ((0, 0), (0, LANES - a.shape[1])))
    rows = [p["wih"], p["whh"], p["b"],
            pad_l(p["ln_gamma"]), pad_l(p["ln_beta"]),
            pad_l(p["w_fc"]), pad_l(p["b_fc"]),
            pad_l(p["trans"]), pad_l(p["start"]), pad_l(p["end"]),
            jnp.zeros((SLAB_ROWS - R_GOLD, LANES), jnp.float32)]   # gold_ts row + padding
    return jnp.concatenate(rows, axis=0)                           # (SLAB_ROWS, 128)


# ---------------- wrapper ----------------
def ner_forward(params, input_ids, attention_mask, seq_label):
    D, H, C = BERT_DIM, HIDDEN, NUM_CLASSES
    Bn, Tn = input_ids.shape

    # BERT stub (glue): token + position embedding, built time-major (T, B, D).
    ids_tb = jnp.transpose(input_ids.astype(jnp.int32))                        # (T, B)
    x_tbd = (params["tok_emb"][ids_tb]
             + params["pos_emb"][:, None, :]).astype(jnp.float32)              # (T, B, D)
    # Stack the time-reversed copy along batch: both LSTM directions share one
    # input projection and one recurrent MXU push per step inside the kernel.
    x_both = jnp.concatenate([x_tbd, x_tbd[::-1]], axis=1)                     # (T, 2B, D)

    # CRF side input (glue): masked one-hot tags; the kernel derives the mask from it.
    tags_tb = jnp.transpose(seq_label.astype(jnp.int32))                       # (T, B)
    mask_tb = jnp.transpose(attention_mask).astype(jnp.float32)                # (T, B)
    ohm = jax.nn.one_hot(tags_tb, C, dtype=jnp.float32) * mask_tb[:, :, None]  # (T, B, C)

    # Gold transition/start/end score depends only on tags/mask/params -> hoisted here.
    trans, start, end = params["trans"], params["start"], params["end"]
    trans_sum = jnp.sum(trans[tags_tb[:-1], tags_tb[1:]] * mask_tb[1:], axis=0)     # (B,)
    st = start[0, tags_tb[0]]                                                       # (B,)
    last_idx = jnp.sum(attention_mask.astype(jnp.int32), axis=1) - 1                # (B,)
    last_tags = seq_label[jnp.arange(Bn), last_idx].astype(jnp.int32)               # (B,)
    ed = end[0, last_tags]                                                          # (B,)
    gold_ts = trans_sum + st + ed

    # Insert the per-call gold score into the pre-packed parameter slab (1 DMA total).
    slab = params["slab"].at[R_GOLD, :Bn].set(gold_ts)

    # Single fused kernel, 3 input DMAs, no VMEM scratch; everything stays in vregs.
    # NOTE(v7x): with a non-toy batch, add a leading "parallel" batch grid axis so both
    # TensorCores are used; at B=2 the single-launch fusion dominates.
    loss = pl.pallas_call(
        fused_ner_kernel,
        out_shape=jax.ShapeDtypeStruct((1, 1), jnp.float32),
        grid=(1,),
        in_specs=[_full_spec((Tn, 2 * Bn, D)),
                  _full_spec((SLAB_ROWS, LANES)),
                  _full_spec((Tn, Bn, C))],
        out_specs=_full_spec((1, 1)),
    )(x_both, slab, ohm)

    return {"loss": loss[0, 0]}


def init_params(key):
    D, H, C = BERT_DIM, HIDDEN, NUM_CLASSES
    ks = jax.random.split(key, 12)
    s = 1.0 / jnp.sqrt(jnp.float32(H))
    u = lambda k, shape: jax.random.uniform(k, shape, jnp.float32, -s, s)
    p = {
        "tok_emb": jax.random.normal(ks[0], (VOCAB, D), jnp.float32) * 0.1,
        "pos_emb": jax.random.normal(ks[1], (T, D), jnp.float32) * 0.1,
        "ln_gamma": jnp.ones((1, D), jnp.float32),
        "ln_beta": jnp.zeros((1, D), jnp.float32),
        # BiLSTM weights in packed layout: columns [fwd i,f,o,g | bwd i,f,o,g], H wide each.
        "wih": u(ks[2], (D, 8 * H)),            # input projection, both directions
        "whh": u(ks[3], (H, 8 * H)),            # recurrent, cols[:4H]=whh_f, [4H:]=whh_b
        "b":   u(ks[4], (1, 8 * H)),            # combined b_ih + b_hh, both directions
        # fc: Linear(2H -> C), rows ordered [forward H ; backward H]
        "w_fc": jax.random.normal(ks[5], (2 * H, C), jnp.float32) * 0.1,
        "b_fc": jnp.zeros((1, C), jnp.float32),
        # CRF (include_start_end_trans=True, allowed_transitions=None)
        "trans": jax.random.normal(ks[6], (C, C), jnp.float32) * 0.1,
        "start": jax.random.normal(ks[7], (1, C), jnp.float32) * 0.1,
        "end":   jax.random.normal(ks[8], (1, C), jnp.float32) * 0.1,
    }
    p["slab"] = pack_param_slab(p)
    return p


if __name__ == "__main__":
    key = jax.random.PRNGKey(0)
    kp, k1, k2 = jax.random.split(key, 3)
    params = init_params(kp)

    input_ids = jax.random.randint(k1, (B, T), 0, VOCAB, dtype=jnp.int32)
    # variable-length mask (lengths 8 and 6) to exercise CRF masking (right-padded)
    lengths = jnp.array([T, T - 2], dtype=jnp.int32)
    attention_mask = (jnp.arange(T)[None, :] < lengths[:, None]).astype(jnp.int32)
    seq_label = jax.random.randint(k2, (B, T), 0, NUM_CLASSES, dtype=jnp.int32)

    out = jax.jit(ner_forward)(params, input_ids, attention_mask, seq_label)
    loss = jax.block_until_ready(out["loss"])
    assert jnp.isfinite(loss), f"non-finite loss: {loss}"
    print("KERNEL_OK")
</pallas_src>

<mosaic_0001>
module attributes {stable_mosaic.version = 11 : i64} {
  func.func @fused_ner_kernel(%arg0: i32, %arg1: memref<8x4x32xf32, #tpu.memory_space<vmem>>, %arg2: memref<96x128xf32, #tpu.memory_space<vmem>>, %arg3: memref<8x2x8xf32, #tpu.memory_space<vmem>>, %arg4: memref<1x1xf32, #tpu.memory_space<vmem>>) attributes {dimension_semantics = [#tpu.dimension_semantics<arbitrary>], iteration_bounds = array<i64: 1>, scalar_prefetch = 0 : i64, scratch_operands = 0 : i64, tpu.core_type = #tpu.core_type<tc>, window_params = [{pipeline_mode = #tpu.pipeline_mode<synchronous>, transform_indices = @transform_0, window_bounds = array<i64: 8, 4, 32>}, {pipeline_mode = #tpu.pipeline_mode<synchronous>, transform_indices = @transform_1, window_bounds = array<i64: 96, 128>}, {pipeline_mode = #tpu.pipeline_mode<synchronous>, transform_indices = @transform_2, window_bounds = array<i64: 8, 2, 8>}, {pipeline_mode = #tpu.pipeline_mode<synchronous>, transform_indices = @transform_3, window_bounds = array<i64: 1, 1>}]} {
    %c0 = arith.constant 0 : index
    %c0_0 = arith.constant 0 : index
    %0 = vector.load %arg2[%c0, %c0_0] : memref<96x128xf32, #tpu.memory_space<vmem>>, vector<32x128xf32>
    %c32 = arith.constant 32 : index
    %c0_1 = arith.constant 0 : index
    %1 = vector.load %arg2[%c32, %c0_1] : memref<96x128xf32, #tpu.memory_space<vmem>>, vector<16x128xf32>
    %c48 = arith.constant 48 : index
    %c0_2 = arith.constant 0 : index
    %2 = vector.load %arg2[%c48, %c0_2] : memref<96x128xf32, #tpu.memory_space<vmem>>, vector<1x128xf32>
    %c49 = arith.constant 49 : index
    %c0_3 = arith.constant 0 : index
    %3 = vector.load %arg2[%c49, %c0_3] : memref<96x128xf32, #tpu.memory_space<vmem>>, vector<1x32xf32>
    %c50 = arith.constant 50 : index
    %c0_4 = arith.constant 0 : index
    %4 = vector.load %arg2[%c50, %c0_4] : memref<96x128xf32, #tpu.memory_space<vmem>>, vector<1x32xf32>
    %c51 = arith.constant 51 : index
    %c0_5 = arith.constant 0 : index
    %5 = vector.load %arg2[%c51, %c0_5] : memref<96x128xf32, #tpu.memory_space<vmem>>, vector<32x8xf32>
    %c83 = arith.constant 83 : index
    %c0_6 = arith.constant 0 : index
    %6 = vector.load %arg2[%c83, %c0_6] : memref<96x128xf32, #tpu.memory_space<vmem>>, vector<1x8xf32>
    %c84 = arith.constant 84 : index
    %c0_7 = arith.constant 0 : index
    %7 = vector.load %arg2[%c84, %c0_7] : memref<96x128xf32, #tpu.memory_space<vmem>>, vector<8x8xf32>
    %c92 = arith.constant 92 : index
    %c0_8 = arith.constant 0 : index
    %8 = vector.load %arg2[%c92, %c0_8] : memref<96x128xf32, #tpu.memory_space<vmem>>, vector<1x8xf32>
    %c93 = arith.constant 93 : index
    %c0_9 = arith.constant 0 : index
    %9 = vector.load %arg2[%c93, %c0_9] : memref<96x128xf32, #tpu.memory_space<vmem>>, vector<1x8xf32>
    %c94 = arith.constant 94 : index
    %c0_10 = arith.constant 0 : index
    %10 = vector.load %arg2[%c94, %c0_10] : memref<96x128xf32, #tpu.memory_space<vmem>>, vector<1x128xf32>
    %c0_11 = arith.constant 0 : index
    %c0_12 = arith.constant 0 : index
    %c0_13 = arith.constant 0 : index
    %11 = vector.load %arg1[%c0_11, %c0_12, %c0_13] : memref<8x4x32xf32, #tpu.memory_space<vmem>>, vector<8x4x32xf32>
    %cst = arith.constant dense<0.000000e+00> : vector<8x4xf32>
    %12 = vector.multi_reduction <add>, %11, %cst [2] : vector<8x4x32xf32> to vector<8x4xf32>
    %13 = vector.shape_cast %12 : vector<8x4xf32> to vector<8x4x1xf32>
    %cst_14 = arith.constant 3.200000e+01 : f32
    %14 = vector.broadcast %cst_14 : f32 to vector<8x4x1xf32>
    %15 = arith.divf %13, %14 : vector<8x4x1xf32>
    %16 = vector.broadcast %15 : vector<8x4x1xf32> to vector<8x4x32xf32>
    %17 = arith.subf %11, %16 : vector<8x4x32xf32>
    %18 = arith.mulf %17, %17 : vector<8x4x32xf32>
    %cst_15 = arith.constant dense<0.000000e+00> : vector<8x4xf32>
    %19 = vector.multi_reduction <add>, %18, %cst_15 [2] : vector<8x4x32xf32> to vector<8x4xf32>
    %20 = vector.shape_cast %19 : vector<8x4xf32> to vector<8x4x1xf32>
    %cst_16 = arith.constant 3.200000e+01 : f32
    %21 = vector.broadcast %cst_16 : f32 to vector<8x4x1xf32>
    %22 = arith.divf %20, %21 : vector<8x4x1xf32>
    %23 = vector.broadcast %15 : vector<8x4x1xf32> to vector<8x4x32xf32>
    %24 = arith.subf %11, %23 : vector<8x4x32xf32>
    %cst_17 = arith.constant 9.99999996E-13 : f32
    %25 = vector.broadcast %cst_17 : f32 to vector<8x4x1xf32>
    %26 = arith.addf %22, %25 : vector<8x4x1xf32>
    %27 = math.rsqrt %26 : vector<8x4x1xf32>
    %28 = vector.broadcast %27 : vector<8x4x1xf32> to vector<8x4x32xf32>
    %29 = arith.mulf %24, %28 : vector<8x4x32xf32>
    %30 = vector.shape_cast %3 : vector<1x32xf32> to vector<1x1x32xf32>
    %31 = vector.broadcast %30 : vector<1x1x32xf32> to vector<8x4x32xf32>
    %32 = arith.mulf %29, %31 : vector<8x4x32xf32>
    %33 = vector.shape_cast %4 : vector<1x32xf32> to vector<1x1x32xf32>
    %34 = vector.broadcast %33 : vector<1x1x32xf32> to vector<8x4x32xf32>
    %35 = arith.addf %32, %34 : vector<8x4x32xf32>
    %cst_18 = arith.constant dense<0.000000e+00> : vector<8x4x128xf32>
    %36 = tpu.matmul %35, %0, %cst_18 {dimension_numbers = #tpu.dot_dimension_numbers<[2], [0], [0, 1], [1], [0, 0, 0, 1, 1, 1], [], []>} : vector<8x4x32xf32>, vector<32x128xf32>, vector<8x4x128xf32> -> vector<8x4x128xf32>
    %37 = vector.shape_cast %2 : vector<1x128xf32> to vector<1x1x128xf32>
    %38 = vector.broadcast %37 : vector<1x1x128xf32> to vector<8x4x128xf32>
    %39 = arith.addf %36, %38 : vector<8x4x128xf32>
    %40 = tpu.iota {dimensions = array<i32: 1>} : vector<1x4x1xi32>
    %c2_i32 = arith.constant 2 : i32
    %41 = vector.broadcast %c2_i32 : i32 to vector<1x4x1xi32>
    %42 = arith.cmpi slt, %40, %41 : vector<1x4x1xi32>
    %43 = vector.extract_strided_slice %39 {offsets = [0, 0, 0], sizes = [8, 4, 64], strides = [1, 1, 1]} : vector<8x4x128xf32> to vector<8x4x64xf32>
    %44 = vector.extract_strided_slice %39 {offsets = [0, 0, 64], sizes = [8, 4, 64], strides = [1, 1, 1]} : vector<8x4x128xf32> to vector<8x4x64xf32>
    %45 = vector.shape_cast %42 : vector<1x4x1xi1> to vector<1x4x1xi1>
    %46 = vector.broadcast %45 : vector<1x4x1xi1> to vector<8x4x64xi1>
    %47 = arith.select %46, %43, %44 : vector<8x4x64xi1>, vector<8x4x64xf32>
    %48 = tpu.iota {dimensions = array<i32: 0>} : vector<4x1xi32>
    %c2_i32_19 = arith.constant 2 : i32
    %49 = vector.broadcast %c2_i32_19 : i32 to vector<4x1xi32>
    %50 = arith.cmpi slt, %48, %49 : vector<4x1xi32>
    %cst_20 = arith.constant 0.000000e+00 : f32
    %51 = vector.broadcast %cst_20 : f32 to vector<4x16xf32>
    %cst_21 = arith.constant 0.000000e+00 : f32
    %52 = vector.broadcast %cst_21 : f32 to vector<4x16xf32>
    %cst_22 = arith.constant dense<0.000000e+00> : vector<4x128xf32>
    %53 = tpu.matmul %51, %1, %cst_22 {dimension_numbers = #tpu.dot_dimension_numbers<[1], [0], [0], [1], [0, 0, 1, 1], [], []>} : vector<4x16xf32>, vector<16x128xf32>, vector<4x128xf32> -> vector<4x128xf32>
    %54 = vector.extract_strided_slice %47 {offsets = [0, 0, 0], sizes = [1, 4, 64], strides = [1, 1, 1]} : vector<8x4x64xf32> to vector<1x4x64xf32>
    %55 = vector.shape_cast %54 : vector<1x4x64xf32> to vector<4x64xf32>
    %56 = vector.extract_strided_slice %53 {offsets = [0, 0], sizes = [4, 64], strides = [1, 1]} : vector<4x128xf32> to vector<4x64xf32>
    %57 = vector.extract_strided_slice %53 {offsets = [0, 64], sizes = [4, 64], strides = [1, 1]} : vector<4x128xf32> to vector<4x64xf32>
    %58 = vector.shape_cast %50 : vector<4x1xi1> to vector<4x1xi1>
    %59 = vector.broadcast %58 : vector<4x1xi1> to vector<4x64xi1>
    %60 = arith.select %59, %56, %57 : vector<4x64xi1>, vector<4x64xf32>
    %61 = arith.addf %55, %60 : vector<4x64xf32>
    %62 = vector.extract_strided_slice %61 {offsets = [0, 0], sizes = [4, 48], strides = [1, 1]} : vector<4x64xf32> to vector<4x48xf32>
    %63 = arith.negf %62 : vector<4x48xf32>
    %64 = math.exp %63 : vector<4x48xf32>
    %cst_23 = arith.constant 1.000000e+00 : f32
    %65 = vector.broadcast %cst_23 : f32 to vector<4x48xf32>
    %66 = arith.addf %65, %64 : vector<4x48xf32>
    %67 = arith.divf %65, %66 : vector<4x48xf32>
    %68 = vector.extract_strided_slice %61 {offsets = [0, 48], sizes = [4, 16], strides = [1, 1]} : vector<4x64xf32> to vector<4x16xf32>
    %69 = math.tanh %68 : vector<4x16xf32>
    %70 = vector.extract_strided_slice %67 {offsets = [0, 16], sizes = [4, 16], strides = [1, 1]} : vector<4x48xf32> to vector<4x16xf32>
    %71 = arith.mulf %70, %52 : vector<4x16xf32>
    %72 = vector.extract_strided_slice %67 {offsets = [0, 0], sizes = [4, 16], strides = [1, 1]} : vector<4x48xf32> to vector<4x16xf32>
    %73 = arith.mulf %72, %69 : vector<4x16xf32>
    %74 = arith.addf %71, %73 : vector<4x16xf32>
    %75 = vector.extract_strided_slice %67 {offsets = [0, 32], sizes = [4, 16], strides = [1, 1]} : vector<4x48xf32> to vector<4x16xf32>
    %76 = math.tanh %74 : vector<4x16xf32>
    %77 = arith.mulf %75, %76 : vector<4x16xf32>
    %cst_24 = arith.constant dense<0.000000e+00> : vector<4x128xf32>
    %78 = tpu.matmul %77, %1, %cst_24 {dimension_numbers = #tpu.dot_dimension_numbers<[1], [0], [0], [1], [0, 0, 1, 1], [], []>} : vector<4x16xf32>, vector<16x128xf32>, vector<4x128xf32> -> vector<4x128xf32>
    %79 = vector.extract_strided_slice %47 {offsets = [1, 0, 0], sizes = [1, 4, 64], strides = [1, 1, 1]} : vector<8x4x64xf32> to vector<1x4x64xf32>
    %80 = vector.shape_cast %79 : vector<1x4x64xf32> to vector<4x64xf32>
    %81 = vector.extract_strided_slice %78 {offsets = [0, 0], sizes = [4, 64], strides = [1, 1]} : vector<4x128xf32> to vector<4x64xf32>
    %82 = vector.extract_strided_slice %78 {offsets = [0, 64], sizes = [4, 64], strides = [1, 1]} : vector<4x128xf32> to vector<4x64xf32>
    %83 = vector.shape_cast %50 : vector<4x1xi1> to vector<4x1xi1>
    %84 = vector.broadcast %83 : vector<4x1xi1> to vector<4x64xi1>
    %85 = arith.select %84, %81, %82 : vector<4x64xi1>, vector<4x64xf32>
    %86 = arith.addf %80, %85 : vector<4x64xf32>
    %87 = vector.extract_strided_slice %86 {offsets = [0, 0], sizes = [4, 48], strides = [1, 1]} : vector<4x64xf32> to vector<4x48xf32>
    %88 = arith.negf %87 : vector<4x48xf32>
    %89 = math.exp %88 : vector<4x48xf32>
    %cst_25 = arith.constant 1.000000e+00 : f32
    %90 = vector.broadcast %cst_25 : f32 to vector<4x48xf32>
    %91 = arith.addf %90, %89 : vector<4x48xf32>
    %92 = arith.divf %90, %91 : vector<4x48xf32>
    %93 = vector.extract_strided_slice %86 {offsets = [0, 48], sizes = [4, 16], strides = [1, 1]} : vector<4x64xf32> to vector<4x16xf32>
    %94 = math.tanh %93 : vector<4x16xf32>
    %95 = vector.extract_strided_slice %92 {offsets = [0, 16], sizes = [4, 16], strides = [1, 1]} : vector<4x48xf32> to vector<4x16xf32>
    %96 = arith.mulf %95, %74 : vector<4x16xf32>
    %97 = vector.extract_strided_slice %92 {offsets = [0, 0], sizes = [4, 16], strides = [1, 1]} : vector<4x48xf32> to vector<4x16xf32>
    %98 = arith.mulf %97, %94 : vector<4x16xf32>
    %99 = arith.addf %96, %98 : vector<4x16xf32>
    %100 = vector.extract_strided_slice %92 {offsets = [0, 32], sizes = [4, 16], strides = [1, 1]} : vector<4x48xf32> to vector<4x16xf32>
    %101 = math.tanh %99 : vector<4x16xf32>
    %102 = arith.mulf %100, %101 : vector<4x16xf32>
    %cst_26 = arith.constant dense<0.000000e+00> : vector<4x128xf32>
    %103 = tpu.matmul %102, %1, %cst_26 {dimension_numbers = #tpu.dot_dimension_numbers<[1], [0], [0], [1], [0, 0, 1, 1], [], []>} : vector<4x16xf32>, vector<16x128xf32>, vector<4x128xf32> -> vector<4x128xf32>
    %104 = vector.extract_strided_slice %47 {offsets = [2, 0, 0], sizes = [1, 4, 64], strides = [1, 1, 1]} : vector<8x4x64xf32> to vector<1x4x64xf32>
    %105 = vector.shape_cast %104 : vector<1x4x64xf32> to vector<4x64xf32>
    %106 = vector.extract_strided_slice %103 {offsets = [0, 0], sizes = [4, 64], strides = [1, 1]} : vector<4x128xf32> to vector<4x64xf32>
    %107 = vector.extract_strided_slice %103 {offsets = [0, 64], sizes = [4, 64], strides = [1, 1]} : vector<4x128xf32> to vector<4x64xf32>
    %108 = vector.shape_cast %50 : vector<4x1xi1> to vector<4x1xi1>
    %109 = vector.broadcast %108 : vector<4x1xi1> to vector<4x64xi1>
    %110 = arith.select %109, %106, %107 : vector<4x64xi1>, vector<4x64xf32>
    %111 = arith.addf %105, %110 : vector<4x64xf32>
    %112 = vector.extract_strided_slice %111 {offsets = [0, 0], sizes = [4, 48], strides = [1, 1]} : vector<4x64xf32> to vector<4x48xf32>
    %113 = arith.negf %112 : vector<4x48xf32>
    %114 = math.exp %113 : vector<4x48xf32>
    %cst_27 = arith.constant 1.000000e+00 : f32
    %115 = vector.broadcast %cst_27 : f32 to vector<4x48xf32>
    %116 = arith.addf %115, %114 : vector<4x48xf32>
    %117 = arith.divf %115, %116 : vector<4x48xf32>
    %118 = vector.extract_strided_slice %111 {offsets = [0, 48], sizes = [4, 16], strides = [1, 1]} : vector<4x64xf32> to vector<4x16xf32>
    %119 = math.tanh %118 : vector<4x16xf32>
    %120 = vector.extract_strided_slice %117 {offsets = [0, 16], sizes = [4, 16], strides = [1, 1]} : vector<4x48xf32> to vector<4x16xf32>
    %121 = arith.mulf %120, %99 : vector<4x16xf32>
    %122 = vector.extract_strided_slice %117 {offsets = [0, 0], sizes = [4, 16], strides = [1, 1]} : vector<4x48xf32> to vector<4x16xf32>
    %123 = arith.mulf %122, %119 : vector<4x16xf32>
    %124 = arith.addf %121, %123 : vector<4x16xf32>
    %125 = vector.extract_strided_slice %117 {offsets = [0, 32], sizes = [4, 16], strides = [1, 1]} : vector<4x48xf32> to vector<4x16xf32>
    %126 = math.tanh %124 : vector<4x16xf32>
    %127 = arith.mulf %125, %126 : vector<4x16xf32>
    %cst_28 = arith.constant dense<0.000000e+00> : vector<4x128xf32>
    %128 = tpu.matmul %127, %1, %cst_28 {dimension_numbers = #tpu.dot_dimension_numbers<[1], [0], [0], [1], [0, 0, 1, 1], [], []>} : vector<4x16xf32>, vector<16x128xf32>, vector<4x128xf32> -> vector<4x128xf32>
    %129 = vector.extract_strided_slice %47 {offsets = [3, 0, 0], sizes = [1, 4, 64], strides = [1, 1, 1]} : vector<8x4x64xf32> to vector<1x4x64xf32>
    %130 = vector.shape_cast %129 : vector<1x4x64xf32> to vector<4x64xf32>
    %131 = vector.extract_strided_slice %128 {offsets = [0, 0], sizes = [4, 64], strides = [1, 1]} : vector<4x128xf32> to vector<4x64xf32>
    %132 = vector.extract_strided_slice %128 {offsets = [0, 64], sizes = [4, 64], strides = [1, 1]} : vector<4x128xf32> to vector<4x64xf32>
    %133 = vector.shape_cast %50 : vector<4x1xi1> to vector<4x1xi1>
    %134 = vector.broadcast %133 : vector<4x1xi1> to vector<4x64xi1>
    %135 = arith.select %134, %131, %132 : vector<4x64xi1>, vector<4x64xf32>
    %136 = arith.addf %130, %135 : vector<4x64xf32>
    %137 = vector.extract_strided_slice %136 {offsets = [0, 0], sizes = [4, 48], strides = [1, 1]} : vector<4x64xf32> to vector<4x48xf32>
    %138 = arith.negf %137 : vector<4x48xf32>
    %139 = math.exp %138 : vector<4x48xf32>
    %cst_29 = arith.constant 1.000000e+00 : f32
    %140 = vector.broadcast %cst_29 : f32 to vector<4x48xf32>
    %141 = arith.addf %140, %139 : vector<4x48xf32>
    %142 = arith.divf %140, %141 : vector<4x48xf32>
    %143 = vector.extract_strided_slice %136 {offsets = [0, 48], sizes = [4, 16], strides = [1, 1]} : vector<4x64xf32> to vector<4x16xf32>
    %144 = math.tanh %143 : vector<4x16xf32>
    %145 = vector.extract_strided_slice %142 {offsets = [0, 16], sizes = [4, 16], strides = [1, 1]} : vector<4x48xf32> to vector<4x16xf32>
    %146 = arith.mulf %145, %124 : vector<4x16xf32>
    %147 = vector.extract_strided_slice %142 {offsets = [0, 0], sizes = [4, 16], strides = [1, 1]} : vector<4x48xf32> to vector<4x16xf32>
    %148 = arith.mulf %147, %144 : vector<4x16xf32>
    %149 = arith.addf %146, %148 : vector<4x16xf32>
    %150 = vector.extract_strided_slice %142 {offsets = [0, 32], sizes = [4, 16], strides = [1, 1]} : vector<4x48xf32> to vector<4x16xf32>
    %151 = math.tanh %149 : vector<4x16xf32>
    %152 = arith.mulf %150, %151 : vector<4x16xf32>
    %cst_30 = arith.constant dense<0.000000e+00> : vector<4x128xf32>
    %153 = tpu.matmul %152, %1, %cst_30 {dimension_numbers = #tpu.dot_dimension_numbers<[1], [0], [0], [1], [0, 0, 1, 1], [], []>} : vector<4x16xf32>, vector<16x128xf32>, vector<4x128xf32> -> vector<4x128xf32>
    %154 = vector.extract_strided_slice %47 {offsets = [4, 0, 0], sizes = [1, 4, 64], strides = [1, 1, 1]} : vector<8x4x64xf32> to vector<1x4x64xf32>
    %155 = vector.shape_cast %154 : vector<1x4x64xf32> to vector<4x64xf32>
    %156 = vector.extract_strided_slice %153 {offsets = [0, 0], sizes = [4, 64], strides = [1, 1]} : vector<4x128xf32> to vector<4x64xf32>
    %157 = vector.extract_strided_slice %153 {offsets = [0, 64], sizes = [4, 64], strides = [1, 1]} : vector<4x128xf32> to vector<4x64xf32>
    %158 = vector.shape_cast %50 : vector<4x1xi1> to vector<4x1xi1>
    %159 = vector.broadcast %158 : vector<4x1xi1> to vector<4x64xi1>
    %160 = arith.select %159, %156, %157 : vector<4x64xi1>, vector<4x64xf32>
    %161 = arith.addf %155, %160 : vector<4x64xf32>
    %162 = vector.extract_strided_slice %161 {offsets = [0, 0], sizes = [4, 48], strides = [1, 1]} : vector<4x64xf32> to vector<4x48xf32>
    %163 = arith.negf %162 : vector<4x48xf32>
    %164 = math.exp %163 : vector<4x48xf32>
    %cst_31 = arith.constant 1.000000e+00 : f32
    %165 = vector.broadcast %cst_31 : f32 to vector<4x48xf32>
    %166 = arith.addf %165, %164 : vector<4x48xf32>
    %167 = arith.divf %165, %166 : vector<4x48xf32>
    %168 = vector.extract_strided_slice %161 {offsets = [0, 48], sizes = [4, 16], strides = [1, 1]} : vector<4x64xf32> to vector<4x16xf32>
    %169 = math.tanh %168 : vector<4x16xf32>
    %170 = vector.extract_strided_slice %167 {offsets = [0, 16], sizes = [4, 16], strides = [1, 1]} : vector<4x48xf32> to vector<4x16xf32>
    %171 = arith.mulf %170, %149 : vector<4x16xf32>
    %172 = vector.extract_strided_slice %167 {offsets = [0, 0], sizes = [4, 16], strides = [1, 1]} : vector<4x48xf32> to vector<4x16xf32>
    %173 = arith.mulf %172, %169 : vector<4x16xf32>
    %174 = arith.addf %171, %173 : vector<4x16xf32>
    %175 = vector.extract_strided_slice %167 {offsets = [0, 32], sizes = [4, 16], strides = [1, 1]} : vector<4x48xf32> to vector<4x16xf32>
    %176 = math.tanh %174 : vector<4x16xf32>
    %177 = arith.mulf %175, %176 : vector<4x16xf32>
    %cst_32 = arith.constant dense<0.000000e+00> : vector<4x128xf32>
    %178 = tpu.matmul %177, %1, %cst_32 {dimension_numbers = #tpu.dot_dimension_numbers<[1], [0], [0], [1], [0, 0, 1, 1], [], []>} : vector<4x16xf32>, vector<16x128xf32>, vector<4x128xf32> -> vector<4x128xf32>
    %179 = vector.extract_strided_slice %47 {offsets = [5, 0, 0], sizes = [1, 4, 64], strides = [1, 1, 1]} : vector<8x4x64xf32> to vector<1x4x64xf32>
    %180 = vector.shape_cast %179 : vector<1x4x64xf32> to vector<4x64xf32>
    %181 = vector.extract_strided_slice %178 {offsets = [0, 0], sizes = [4, 64], strides = [1, 1]} : vector<4x128xf32> to vector<4x64xf32>
    %182 = vector.extract_strided_slice %178 {offsets = [0, 64], sizes = [4, 64], strides = [1, 1]} : vector<4x128xf32> to vector<4x64xf32>
    %183 = vector.shape_cast %50 : vector<4x1xi1> to vector<4x1xi1>
    %184 = vector.broadcast %183 : vector<4x1xi1> to vector<4x64xi1>
    %185 = arith.select %184, %181, %182 : vector<4x64xi1>, vector<4x64xf32>
    %186 = arith.addf %180, %185 : vector<4x64xf32>
    %187 = vector.extract_strided_slice %186 {offsets = [0, 0], sizes = [4, 48], strides = [1, 1]} : vector<4x64xf32> to vector<4x48xf32>
    %188 = arith.negf %187 : vector<4x48xf32>
    %189 = math.exp %188 : vector<4x48xf32>
    %cst_33 = arith.constant 1.000000e+00 : f32
    %190 = vector.broadcast %cst_33 : f32 to vector<4x48xf32>
    %191 = arith.addf %190, %189 : vector<4x48xf32>
    %192 = arith.divf %190, %191 : vector<4x48xf32>
    %193 = vector.extract_strided_slice %186 {offsets = [0, 48], sizes = [4, 16], strides = [1, 1]} : vector<4x64xf32> to vector<4x16xf32>
    %194 = math.tanh %193 : vector<4x16xf32>
    %195 = vector.extract_strided_slice %192 {offsets = [0, 16], sizes = [4, 16], strides = [1, 1]} : vector<4x48xf32> to vector<4x16xf32>
    %196 = arith.mulf %195, %174 : vector<4x16xf32>
    %197 = vector.extract_strided_slice %192 {offsets = [0, 0], sizes = [4, 16], strides = [1, 1]} : vector<4x48xf32> to vector<4x16xf32>
    %198 = arith.mulf %197, %194 : vector<4x16xf32>
    %199 = arith.addf %196, %198 : vector<4x16xf32>
    %200 = vector.extract_strided_slice %192 {offsets = [0, 32], sizes = [4, 16], strides = [1, 1]} : vector<4x48xf32> to vector<4x16xf32>
    %201 = math.tanh %199 : vector<4x16xf32>
    %202 = arith.mulf %200, %201 : vector<4x16xf32>
    %cst_34 = arith.constant dense<0.000000e+00> : vector<4x128xf32>
    %203 = tpu.matmul %202, %1, %cst_34 {dimension_numbers = #tpu.dot_dimension_numbers<[1], [0], [0], [1], [0, 0, 1, 1], [], []>} : vector<4x16xf32>, vector<16x128xf32>, vector<4x128xf32> -> vector<4x128xf32>
    %204 = vector.extract_strided_slice %47 {offsets = [6, 0, 0], sizes = [1, 4, 64], strides = [1, 1, 1]} : vector<8x4x64xf32> to vector<1x4x64xf32>
    %205 = vector.shape_cast %204 : vector<1x4x64xf32> to vector<4x64xf32>
    %206 = vector.extract_strided_slice %203 {offsets = [0, 0], sizes = [4, 64], strides = [1, 1]} : vector<4x128xf32> to vector<4x64xf32>
    %207 = vector.extract_strided_slice %203 {offsets = [0, 64], sizes = [4, 64], strides = [1, 1]} : vector<4x128xf32> to vector<4x64xf32>
    %208 = vector.shape_cast %50 : vector<4x1xi1> to vector<4x1xi1>
    %209 = vector.broadcast %208 : vector<4x1xi1> to vector<4x64xi1>
    %210 = arith.select %209, %206, %207 : vector<4x64xi1>, vector<4x64xf32>
    %211 = arith.addf %205, %210 : vector<4x64xf32>
    %212 = vector.extract_strided_slice %211 {offsets = [0, 0], sizes = [4, 48], strides = [1, 1]} : vector<4x64xf32> to vector<4x48xf32>
    %213 = arith.negf %212 : vector<4x48xf32>
    %214 = math.exp %213 : vector<4x48xf32>
    %cst_35 = arith.constant 1.000000e+00 : f32
    %215 = vector.broadcast %cst_35 : f32 to vector<4x48xf32>
    %216 = arith.addf %215, %214 : vector<4x48xf32>
    %217 = arith.divf %215, %216 : vector<4x48xf32>
    %218 = vector.extract_strided_slice %211 {offsets = [0, 48], sizes = [4, 16], strides = [1, 1]} : vector<4x64xf32> to vector<4x16xf32>
    %219 = math.tanh %218 : vector<4x16xf32>
    %220 = vector.extract_strided_slice %217 {offsets = [0, 16], sizes = [4, 16], strides = [1, 1]} : vector<4x48xf32> to vector<4x16xf32>
    %221 = arith.mulf %220, %199 : vector<4x16xf32>
    %222 = vector.extract_strided_slice %217 {offsets = [0, 0], sizes = [4, 16], strides = [1, 1]} : vector<4x48xf32> to vector<4x16xf32>
    %223 = arith.mulf %222, %219 : vector<4x16xf32>
    %224 = arith.addf %221, %223 : vector<4x16xf32>
    %225 = vector.extract_strided_slice %217 {offsets = [0, 32], sizes = [4, 16], strides = [1, 1]} : vector<4x48xf32> to vector<4x16xf32>
    %226 = math.tanh %224 : vector<4x16xf32>
    %227 = arith.mulf %225, %226 : vector<4x16xf32>
    %cst_36 = arith.constant dense<0.000000e+00> : vector<4x128xf32>
    %228 = tpu.matmul %227, %1, %cst_36 {dimension_numbers = #tpu.dot_dimension_numbers<[1], [0], [0], [1], [0, 0, 1, 1], [], []>} : vector<4x16xf32>, vector<16x128xf32>, vector<4x128xf32> -> vector<4x128xf32>
    %229 = vector.extract_strided_slice %47 {offsets = [7, 0, 0], sizes = [1, 4, 64], strides = [1, 1, 1]} : vector<8x4x64xf32> to vector<1x4x64xf32>
    %230 = vector.shape_cast %229 : vector<1x4x64xf32> to vector<4x64xf32>
    %231 = vector.extract_strided_slice %228 {offsets = [0, 0], sizes = [4, 64], strides = [1, 1]} : vector<4x128xf32> to vector<4x64xf32>
    %232 = vector.extract_strided_slice %228 {offsets = [0, 64], sizes = [4, 64], strides = [1, 1]} : vector<4x128xf32> to vector<4x64xf32>
    %233 = vector.shape_cast %50 : vector<4x1xi1> to vector<4x1xi1>
    %234 = vector.broadcast %233 : vector<4x1xi1> to vector<4x64xi1>
    %235 = arith.select %234, %231, %232 : vector<4x64xi1>, vector<4x64xf32>
    %236 = arith.addf %230, %235 : vector<4x64xf32>
    %237 = vector.extract_strided_slice %236 {offsets = [0, 0], sizes = [4, 48], strides = [1, 1]} : vector<4x64xf32> to vector<4x48xf32>
    %238 = arith.negf %237 : vector<4x48xf32>
    %239 = math.exp %238 : vector<4x48xf32>
    %cst_37 = arith.constant 1.000000e+00 : f32
    %240 = vector.broadcast %cst_37 : f32 to vector<4x48xf32>
    %241 = arith.addf %240, %239 : vector<4x48xf32>
    %242 = arith.divf %240, %241 : vector<4x48xf32>
    %243 = vector.extract_strided_slice %236 {offsets = [0, 48], sizes = [4, 16], strides = [1, 1]} : vector<4x64xf32> to vector<4x16xf32>
    %244 = math.tanh %243 : vector<4x16xf32>
    %245 = vector.extract_strided_slice %242 {offsets = [0, 16], sizes = [4, 16], strides = [1, 1]} : vector<4x48xf32> to vector<4x16xf32>
    %246 = arith.mulf %245, %224 : vector<4x16xf32>
    %247 = vector.extract_strided_slice %242 {offsets = [0, 0], sizes = [4, 16], strides = [1, 1]} : vector<4x48xf32> to vector<4x16xf32>
    %248 = arith.mulf %247, %244 : vector<4x16xf32>
    %249 = arith.addf %246, %248 : vector<4x16xf32>
    %250 = vector.extract_strided_slice %242 {offsets = [0, 32], sizes = [4, 16], strides = [1, 1]} : vector<4x48xf32> to vector<4x16xf32>
    %251 = math.tanh %249 : vector<4x16xf32>
    %252 = arith.mulf %250, %251 : vector<4x16xf32>
    %253 = vector.extract_strided_slice %77 {offsets = [0, 0], sizes = [2, 16], strides = [1, 1]} : vector<4x16xf32> to vector<2x16xf32>
    %254 = vector.extract_strided_slice %102 {offsets = [0, 0], sizes = [2, 16], strides = [1, 1]} : vector<4x16xf32> to vector<2x16xf32>
    %255 = vector.extract_strided_slice %127 {offsets = [0, 0], sizes = [2, 16], strides = [1, 1]} : vector<4x16xf32> to vector<2x16xf32>
    %256 = vector.extract_strided_slice %152 {offsets = [0, 0], sizes = [2, 16], strides = [1, 1]} : vector<4x16xf32> to vector<2x16xf32>
    %257 = vector.extract_strided_slice %177 {offsets = [0, 0], sizes = [2, 16], strides = [1, 1]} : vector<4x16xf32> to vector<2x16xf32>
    %258 = vector.extract_strided_slice %202 {offsets = [0, 0], sizes = [2, 16], strides = [1, 1]} : vector<4x16xf32> to vector<2x16xf32>
    %259 = vector.extract_strided_slice %227 {offsets = [0, 0], sizes = [2, 16], strides = [1, 1]} : vector<4x16xf32> to vector<2x16xf32>
    %260 = vector.extract_strided_slice %252 {offsets = [0, 0], sizes = [2, 16], strides = [1, 1]} : vector<4x16xf32> to vector<2x16xf32>
    %261 = vector.shape_cast %253 : vector<2x16xf32> to vector<1x2x16xf32>
    %262 = vector.shape_cast %254 : vector<2x16xf32> to vector<1x2x16xf32>
    %263 = vector.shape_cast %255 : vector<2x16xf32> to vector<1x2x16xf32>
    %264 = vector.shape_cast %256 : vector<2x16xf32> to vector<1x2x16xf32>
    %265 = vector.shape_cast %257 : vector<2x16xf32> to vector<1x2x16xf32>
    %266 = vector.shape_cast %258 : vector<2x16xf32> to vector<1x2x16xf32>
    %267 = vector.shape_cast %259 : vector<2x16xf32> to vector<1x2x16xf32>
    %268 = vector.shape_cast %260 : vector<2x16xf32> to vector<1x2x16xf32>
    %269 = tpu.concatenate %261, %262, %263, %264, %265, %266, %267, %268 in 0 : vector<1x2x16xf32>, vector<1x2x16xf32>, vector<1x2x16xf32>, vector<1x2x16xf32>, vector<1x2x16xf32>, vector<1x2x16xf32>, vector<1x2x16xf32>, vector<1x2x16xf32> -> vector<8x2x16xf32>
    %270 = vector.extract_strided_slice %252 {offsets = [2, 0], sizes = [2, 16], strides = [1, 1]} : vector<4x16xf32> to vector<2x16xf32>
    %271 = vector.extract_strided_slice %227 {offsets = [2, 0], sizes = [2, 16], strides = [1, 1]} : vector<4x16xf32> to vector<2x16xf32>
    %272 = vector.extract_strided_slice %202 {offsets = [2, 0], sizes = [2, 16], strides = [1, 1]} : vector<4x16xf32> to vector<2x16xf32>
    %273 = vector.extract_strided_slice %177 {offsets = [2, 0], sizes = [2, 16], strides = [1, 1]} : vector<4x16xf32> to vector<2x16xf32>
    %274 = vector.extract_strided_slice %152 {offsets = [2, 0], sizes = [2, 16], strides = [1, 1]} : vector<4x16xf32> to vector<2x16xf32>
    %275 = vector.extract_strided_slice %127 {offsets = [2, 0], sizes = [2, 16], strides = [1, 1]} : vector<4x16xf32> to vector<2x16xf32>
    %276 = vector.extract_strided_slice %102 {offsets = [2, 0], sizes = [2, 16], strides = [1, 1]} : vector<4x16xf32> to vector<2x16xf32>
    %277 = vector.extract_strided_slice %77 {offsets = [2, 0], sizes = [2, 16], strides = [1, 1]} : vector<4x16xf32> to vector<2x16xf32>
    %278 = vector.shape_cast %270 : vector<2x16xf32> to vector<1x2x16xf32>
    %279 = vector.shape_cast %271 : vector<2x16xf32> to vector<1x2x16xf32>
    %280 = vector.shape_cast %272 : vector<2x16xf32> to vector<1x2x16xf32>
    %281 = vector.shape_cast %273 : vector<2x16xf32> to vector<1x2x16xf32>
    %282 = vector.shape_cast %274 : vector<2x16xf32> to vector<1x2x16xf32>
    %283 = vector.shape_cast %275 : vector<2x16xf32> to vector<1x2x16xf32>
    %284 = vector.shape_cast %276 : vector<2x16xf32> to vector<1x2x16xf32>
    %285 = vector.shape_cast %277 : vector<2x16xf32> to vector<1x2x16xf32>
    %286 = tpu.concatenate %278, %279, %280, %281, %282, %283, %284, %285 in 0 : vector<1x2x16xf32>, vector<1x2x16xf32>, vector<1x2x16xf32>, vector<1x2x16xf32>, vector<1x2x16xf32>, vector<1x2x16xf32>, vector<1x2x16xf32>, vector<1x2x16xf32> -> vector<8x2x16xf32>
    %287 = tpu.concatenate %269, %286 in 2 : vector<8x2x16xf32>, vector<8x2x16xf32> -> vector<8x2x32xf32>
    %cst_38 = arith.constant dense<0.000000e+00> : vector<8x2x8xf32>
    %288 = tpu.matmul %287, %5, %cst_38 {dimension_numbers = #tpu.dot_dimension_numbers<[2], [0], [0, 1], [1], [0, 0, 0, 1, 1, 1], [], []>} : vector<8x2x32xf32>, vector<32x8xf32>, vector<8x2x8xf32> -> vector<8x2x8xf32>
    %289 = vector.shape_cast %6 : vector<1x8xf32> to vector<1x1x8xf32>
    %290 = vector.broadcast %289 : vector<1x1x8xf32> to vector<8x2x8xf32>
    %291 = arith.addf %288, %290 : vector<8x2x8xf32>
    %cst_39 = arith.constant dense<0xFF800000> : vector<8x2xf32>
    %292 = vector.multi_reduction <maximumf>, %291, %cst_39 [2] : vector<8x2x8xf32> to vector<8x2xf32>
    %293 = vector.shape_cast %292 : vector<8x2xf32> to vector<8x2x1xf32>
    %294 = vector.broadcast %293 : vector<8x2x1xf32> to vector<8x2x8xf32>
    %295 = arith.subf %291, %294 : vector<8x2x8xf32>
    %296 = vector.broadcast %293 : vector<8x2x1xf32> to vector<8x2x8xf32>
    %297 = arith.subf %291, %296 : vector<8x2x8xf32>
    %298 = math.exp %297 : vector<8x2x8xf32>
    %cst_40 = arith.constant dense<0.000000e+00> : vector<8x2xf32>
    %299 = vector.multi_reduction <add>, %298, %cst_40 [2] : vector<8x2x8xf32> to vector<8x2xf32>
    %300 = vector.shape_cast %299 : vector<8x2xf32> to vector<8x2x1xf32>
    %301 = math.log %300 : vector<8x2x1xf32>
    %302 = vector.broadcast %301 : vector<8x2x1xf32> to vector<8x2x8xf32>
    %303 = arith.subf %295, %302 : vector<8x2x8xf32>
    %c0_41 = arith.constant 0 : index
    %c0_42 = arith.constant 0 : index
    %c0_43 = arith.constant 0 : index
    %304 = vector.load %arg3[%c0_41, %c0_42, %c0_43] : memref<8x2x8xf32, #tpu.memory_space<vmem>>, vector<8x2x8xf32>
    %cst_44 = arith.constant dense<0.000000e+00> : vector<8x2xf32>
    %305 = vector.multi_reduction <add>, %304, %cst_44 [2] : vector<8x2x8xf32> to vector<8x2xf32>
    %306 = vector.shape_cast %305 : vector<8x2xf32> to vector<8x2x1xf32>
    %307 = math.exp %7 : vector<8x8xf32>
    %308 = vector.extract_strided_slice %303 {offsets = [0, 0, 0], sizes = [1, 2, 8], strides = [1, 1, 1]} : vector<8x2x8xf32> to vector<1x2x8xf32>
    %309 = vector.shape_cast %308 : vector<1x2x8xf32> to vector<2x8xf32>
    %310 = vector.broadcast %8 : vector<1x8xf32> to vector<2x8xf32>
    %311 = arith.addf %309, %310 : vector<2x8xf32>
    %cst_45 = arith.constant dense<0xFF800000> : vector<2xf32>
    %312 = vector.multi_reduction <maximumf>, %311, %cst_45 [1] : vector<2x8xf32> to vector<2xf32>
    %313 = vector.shape_cast %312 : vector<2xf32> to vector<2x1xf32>
    %314 = vector.extract_strided_slice %303 {offsets = [1, 0, 0], sizes = [1, 2, 8], strides = [1, 1, 1]} : vector<8x2x8xf32> to vector<1x2x8xf32>
    %315 = vector.shape_cast %314 : vector<1x2x8xf32> to vector<2x8xf32>
    %316 = vector.broadcast %313 : vector<2x1xf32> to vector<2x8xf32>
    %317 = arith.addf %315, %316 : vector<2x8xf32>
    %318 = vector.broadcast %313 : vector<2x1xf32> to vector<2x8xf32>
    %319 = arith.subf %311, %318 : vector<2x8xf32>
    %320 = math.exp %319 : vector<2x8xf32>
    %cst_46 = arith.constant dense<0.000000e+00> : vector<2x8xf32>
    %321 = tpu.matmul %320, %307, %cst_46 {dimension_numbers = #tpu.dot_dimension_numbers<[1], [0], [0], [1], [0, 0, 1, 1], [], []>} : vector<2x8xf32>, vector<8x8xf32>, vector<2x8xf32> -> vector<2x8xf32>
    %322 = math.log %321 : vector<2x8xf32>
    %323 = arith.addf %317, %322 : vector<2x8xf32>
    %324 = vector.extract_strided_slice %306 {offsets = [1, 0, 0], sizes = [1, 2, 1], strides = [1, 1, 1]} : vector<8x2x1xf32> to vector<1x2x1xf32>
    %325 = vector.shape_cast %324 : vector<1x2x1xf32> to vector<2x1xf32>
    %cst_47 = arith.constant 0.000000e+00 : f32
    %326 = vector.broadcast %cst_47 : f32 to vector<2x1xf32>
    %327 = arith.cmpf ogt, %325, %326 : vector<2x1xf32>
    %328 = vector.shape_cast %327 : vector<2x1xi1> to vector<2x1xi1>
    %329 = vector.broadcast %328 : vector<2x1xi1> to vector<2x8xi1>
    %330 = arith.select %329, %323, %311 : vector<2x8xi1>, vector<2x8xf32>
    %cst_48 = arith.constant dense<0xFF800000> : vector<2xf32>
    %331 = vector.multi_reduction <maximumf>, %330, %cst_48 [1] : vector<2x8xf32> to vector<2xf32>
    %332 = vector.shape_cast %331 : vector<2xf32> to vector<2x1xf32>
    %333 = vector.extract_strided_slice %303 {offsets = [2, 0, 0], sizes = [1, 2, 8], strides = [1, 1, 1]} : vector<8x2x8xf32> to vector<1x2x8xf32>
    %334 = vector.shape_cast %333 : vector<1x2x8xf32> to vector<2x8xf32>
    %335 = vector.broadcast %332 : vector<2x1xf32> to vector<2x8xf32>
    %336 = arith.addf %334, %335 : vector<2x8xf32>
    %337 = vector.broadcast %332 : vector<2x1xf32> to vector<2x8xf32>
    %338 = arith.subf %330, %337 : vector<2x8xf32>
    %339 = math.exp %338 : vector<2x8xf32>
    %cst_49 = arith.constant dense<0.000000e+00> : vector<2x8xf32>
    %340 = tpu.matmul %339, %307, %cst_49 {dimension_numbers = #tpu.dot_dimension_numbers<[1], [0], [0], [1], [0, 0, 1, 1], [], []>} : vector<2x8xf32>, vector<8x8xf32>, vector<2x8xf32> -> vector<2x8xf32>
    %341 = math.log %340 : vector<2x8xf32>
    %342 = arith.addf %336, %341 : vector<2x8xf32>
    %343 = vector.extract_strided_slice %306 {offsets = [2, 0, 0], sizes = [1, 2, 1], strides = [1, 1, 1]} : vector<8x2x1xf32> to vector<1x2x1xf32>
    %344 = vector.shape_cast %343 : vector<1x2x1xf32> to vector<2x1xf32>
    %cst_50 = arith.constant 0.000000e+00 : f32
    %345 = vector.broadcast %cst_50 : f32 to vector<2x1xf32>
    %346 = arith.cmpf ogt, %344, %345 : vector<2x1xf32>
    %347 = vector.shape_cast %346 : vector<2x1xi1> to vector<2x1xi1>
    %348 = vector.broadcast %347 : vector<2x1xi1> to vector<2x8xi1>
    %349 = arith.select %348, %342, %330 : vector<2x8xi1>, vector<2x8xf32>
    %cst_51 = arith.constant dense<0xFF800000> : vector<2xf32>
    %350 = vector.multi_reduction <maximumf>, %349, %cst_51 [1] : vector<2x8xf32> to vector<2xf32>
    %351 = vector.shape_cast %350 : vector<2xf32> to vector<2x1xf32>
    %352 = vector.extract_strided_slice %303 {offsets = [3, 0, 0], sizes = [1, 2, 8], strides = [1, 1, 1]} : vector<8x2x8xf32> to vector<1x2x8xf32>
    %353 = vector.shape_cast %352 : vector<1x2x8xf32> to vector<2x8xf32>
    %354 = vector.broadcast %351 : vector<2x1xf32> to vector<2x8xf32>
    %355 = arith.addf %353, %354 : vector<2x8xf32>
    %356 = vector.broadcast %351 : vector<2x1xf32> to vector<2x8xf32>
    %357 = arith.subf %349, %356 : vector<2x8xf32>
    %358 = math.exp %357 : vector<2x8xf32>
    %cst_52 = arith.constant dense<0.000000e+00> : vector<2x8xf32>
    %359 = tpu.matmul %358, %307, %cst_52 {dimension_numbers = #tpu.dot_dimension_numbers<[1], [0], [0], [1], [0, 0, 1, 1], [], []>} : vector<2x8xf32>, vector<8x8xf32>, vector<2x8xf32> -> vector<2x8xf32>
    %360 = math.log %359 : vector<2x8xf32>
    %361 = arith.addf %355, %360 : vector<2x8xf32>
    %362 = vector.extract_strided_slice %306 {offsets = [3, 0, 0], sizes = [1, 2, 1], strides = [1, 1, 1]} : vector<8x2x1xf32> to vector<1x2x1xf32>
    %363 = vector.shape_cast %362 : vector<1x2x1xf32> to vector<2x1xf32>
    %cst_53 = arith.constant 0.000000e+00 : f32
    %364 = vector.broadcast %cst_53 : f32 to vector<2x1xf32>
    %365 = arith.cmpf ogt, %363, %364 : vector<2x1xf32>
    %366 = vector.shape_cast %365 : vector<2x1xi1> to vector<2x1xi1>
    %367 = vector.broadcast %366 : vector<2x1xi1> to vector<2x8xi1>
    %368 = arith.select %367, %361, %349 : vector<2x8xi1>, vector<2x8xf32>
    %cst_54 = arith.constant dense<0xFF800000> : vector<2xf32>
    %369 = vector.multi_reduction <maximumf>, %368, %cst_54 [1] : vector<2x8xf32> to vector<2xf32>
    %370 = vector.shape_cast %369 : vector<2xf32> to vector<2x1xf32>
    %371 = vector.extract_strided_slice %303 {offsets = [4, 0, 0], sizes = [1, 2, 8], strides = [1, 1, 1]} : vector<8x2x8xf32> to vector<1x2x8xf32>
    %372 = vector.shape_cast %371 : vector<1x2x8xf32> to vector<2x8xf32>
    %373 = vector.broadcast %370 : vector<2x1xf32> to vector<2x8xf32>
    %374 = arith.addf %372, %373 : vector<2x8xf32>
    %375 = vector.broadcast %370 : vector<2x1xf32> to vector<2x8xf32>
    %376 = arith.subf %368, %375 : vector<2x8xf32>
    %377 = math.exp %376 : vector<2x8xf32>
    %cst_55 = arith.constant dense<0.000000e+00> : vector<2x8xf32>
    %378 = tpu.matmul %377, %307, %cst_55 {dimension_numbers = #tpu.dot_dimension_numbers<[1], [0], [0], [1], [0, 0, 1, 1], [], []>} : vector<2x8xf32>, vector<8x8xf32>, vector<2x8xf32> -> vector<2x8xf32>
    %379 = math.log %378 : vector<2x8xf32>
    %380 = arith.addf %374, %379 : vector<2x8xf32>
    %381 = vector.extract_strided_slice %306 {offsets = [4, 0, 0], sizes = [1, 2, 1], strides = [1, 1, 1]} : vector<8x2x1xf32> to vector<1x2x1xf32>
    %382 = vector.shape_cast %381 : vector<1x2x1xf32> to vector<2x1xf32>
    %cst_56 = arith.constant 0.000000e+00 : f32
    %383 = vector.broadcast %cst_56 : f32 to vector<2x1xf32>
    %384 = arith.cmpf ogt, %382, %383 : vector<2x1xf32>
    %385 = vector.shape_cast %384 : vector<2x1xi1> to vector<2x1xi1>
    %386 = vector.broadcast %385 : vector<2x1xi1> to vector<2x8xi1>
    %387 = arith.select %386, %380, %368 : vector<2x8xi1>, vector<2x8xf32>
    %cst_57 = arith.constant dense<0xFF800000> : vector<2xf32>
    %388 = vector.multi_reduction <maximumf>, %387, %cst_57 [1] : vector<2x8xf32> to vector<2xf32>
    %389 = vector.shape_cast %388 : vector<2xf32> to vector<2x1xf32>
    %390 = vector.extract_strided_slice %303 {offsets = [5, 0, 0], sizes = [1, 2, 8], strides = [1, 1, 1]} : vector<8x2x8xf32> to vector<1x2x8xf32>
    %391 = vector.shape_cast %390 : vector<1x2x8xf32> to vector<2x8xf32>
    %392 = vector.broadcast %389 : vector<2x1xf32> to vector<2x8xf32>
    %393 = arith.addf %391, %392 : vector<2x8xf32>
    %394 = vector.broadcast %389 : vector<2x1xf32> to vector<2x8xf32>
    %395 = arith.subf %387, %394 : vector<2x8xf32>
    %396 = math.exp %395 : vector<2x8xf32>
    %cst_58 = arith.constant dense<0.000000e+00> : vector<2x8xf32>
    %397 = tpu.matmul %396, %307, %cst_58 {dimension_numbers = #tpu.dot_dimension_numbers<[1], [0], [0], [1], [0, 0, 1, 1], [], []>} : vector<2x8xf32>, vector<8x8xf32>, vector<2x8xf32> -> vector<2x8xf32>
    %398 = math.log %397 : vector<2x8xf32>
    %399 = arith.addf %393, %398 : vector<2x8xf32>
    %400 = vector.extract_strided_slice %306 {offsets = [5, 0, 0], sizes = [1, 2, 1], strides = [1, 1, 1]} : vector<8x2x1xf32> to vector<1x2x1xf32>
    %401 = vector.shape_cast %400 : vector<1x2x1xf32> to vector<2x1xf32>
    %cst_59 = arith.constant 0.000000e+00 : f32
    %402 = vector.broadcast %cst_59 : f32 to vector<2x1xf32>
    %403 = arith.cmpf ogt, %401, %402 : vector<2x1xf32>
    %404 = vector.shape_cast %403 : vector<2x1xi1> to vector<2x1xi1>
    %405 = vector.broadcast %404 : vector<2x1xi1> to vector<2x8xi1>
    %406 = arith.select %405, %399, %387 : vector<2x8xi1>, vector<2x8xf32>
    %cst_60 = arith.constant dense<0xFF800000> : vector<2xf32>
    %407 = vector.multi_reduction <maximumf>, %406, %cst_60 [1] : vector<2x8xf32> to vector<2xf32>
    %408 = vector.shape_cast %407 : vector<2xf32> to vector<2x1xf32>
    %409 = vector.extract_strided_slice %303 {offsets = [6, 0, 0], sizes = [1, 2, 8], strides = [1, 1, 1]} : vector<8x2x8xf32> to vector<1x2x8xf32>
    %410 = vector.shape_cast %409 : vector<1x2x8xf32> to vector<2x8xf32>
    %411 = vector.broadcast %408 : vector<2x1xf32> to vector<2x8xf32>
    %412 = arith.addf %410, %411 : vector<2x8xf32>
    %413 = vector.broadcast %408 : vector<2x1xf32> to vector<2x8xf32>
    %414 = arith.subf %406, %413 : vector<2x8xf32>
    %415 = math.exp %414 : vector<2x8xf32>
    %cst_61 = arith.constant dense<0.000000e+00> : vector<2x8xf32>
    %416 = tpu.matmul %415, %307, %cst_61 {dimension_numbers = #tpu.dot_dimension_numbers<[1], [0], [0], [1], [0, 0, 1, 1], [], []>} : vector<2x8xf32>, vector<8x8xf32>, vector<2x8xf32> -> vector<2x8xf32>
    %417 = math.log %416 : vector<2x8xf32>
    %418 = arith.addf %412, %417 : vector<2x8xf32>
    %419 = vector.extract_strided_slice %306 {offsets = [6, 0, 0], sizes = [1, 2, 1], strides = [1, 1, 1]} : vector<8x2x1xf32> to vector<1x2x1xf32>
    %420 = vector.shape_cast %419 : vector<1x2x1xf32> to vector<2x1xf32>
    %cst_62 = arith.constant 0.000000e+00 : f32
    %421 = vector.broadcast %cst_62 : f32 to vector<2x1xf32>
    %422 = arith.cmpf ogt, %420, %421 : vector<2x1xf32>
    %423 = vector.shape_cast %422 : vector<2x1xi1> to vector<2x1xi1>
    %424 = vector.broadcast %423 : vector<2x1xi1> to vector<2x8xi1>
    %425 = arith.select %424, %418, %406 : vector<2x8xi1>, vector<2x8xf32>
    %cst_63 = arith.constant dense<0xFF800000> : vector<2xf32>
    %426 = vector.multi_reduction <maximumf>, %425, %cst_63 [1] : vector<2x8xf32> to vector<2xf32>
    %427 = vector.shape_cast %426 : vector<2xf32> to vector<2x1xf32>
    %428 = vector.extract_strided_slice %303 {offsets = [7, 0, 0], sizes = [1, 2, 8], strides = [1, 1, 1]} : vector<8x2x8xf32> to vector<1x2x8xf32>
    %429 = vector.shape_cast %428 : vector<1x2x8xf32> to vector<2x8xf32>
    %430 = vector.broadcast %427 : vector<2x1xf32> to vector<2x8xf32>
    %431 = arith.addf %429, %430 : vector<2x8xf32>
    %432 = vector.broadcast %427 : vector<2x1xf32> to vector<2x8xf32>
    %433 = arith.subf %425, %432 : vector<2x8xf32>
    %434 = math.exp %433 : vector<2x8xf32>
    %cst_64 = arith.constant dense<0.000000e+00> : vector<2x8xf32>
    %435 = tpu.matmul %434, %307, %cst_64 {dimension_numbers = #tpu.dot_dimension_numbers<[1], [0], [0], [1], [0, 0, 1, 1], [], []>} : vector<2x8xf32>, vector<8x8xf32>, vector<2x8xf32> -> vector<2x8xf32>
    %436 = math.log %435 : vector<2x8xf32>
    %437 = arith.addf %431, %436 : vector<2x8xf32>
    %438 = vector.extract_strided_slice %306 {offsets = [7, 0, 0], sizes = [1, 2, 1], strides = [1, 1, 1]} : vector<8x2x1xf32> to vector<1x2x1xf32>
    %439 = vector.shape_cast %438 : vector<1x2x1xf32> to vector<2x1xf32>
    %cst_65 = arith.constant 0.000000e+00 : f32
    %440 = vector.broadcast %cst_65 : f32 to vector<2x1xf32>
    %441 = arith.cmpf ogt, %439, %440 : vector<2x1xf32>
    %442 = vector.shape_cast %441 : vector<2x1xi1> to vector<2x1xi1>
    %443 = vector.broadcast %442 : vector<2x1xi1> to vector<2x8xi1>
    %444 = arith.select %443, %437, %425 : vector<2x8xi1>, vector<2x8xf32>
    %445 = vector.broadcast %9 : vector<1x8xf32> to vector<2x8xf32>
    %446 = arith.addf %444, %445 : vector<2x8xf32>
    %cst_66 = arith.constant dense<0xFF800000> : vector<2xf32>
    %447 = vector.multi_reduction <maximumf>, %446, %cst_66 [1] : vector<2x8xf32> to vector<2xf32>
    %448 = vector.shape_cast %447 : vector<2xf32> to vector<2x1xf32>
    %449 = vector.broadcast %448 : vector<2x1xf32> to vector<2x8xf32>
    %450 = arith.subf %446, %449 : vector<2x8xf32>
    %451 = math.exp %450 : vector<2x8xf32>
    %cst_67 = arith.constant dense<0.000000e+00> : vector<2xf32>
    %452 = vector.multi_reduction <add>, %451, %cst_67 [1] : vector<2x8xf32> to vector<2xf32>
    %453 = vector.shape_cast %452 : vector<2xf32> to vector<2x1xf32>
    %454 = math.log %453 : vector<2x1xf32>
    %455 = arith.addf %448, %454 : vector<2x1xf32>
    %456 = arith.mulf %303, %304 : vector<8x2x8xf32>
    %457 = vector.shape_cast %456 : vector<8x2x8xf32> to vector<1x8x2x8xf32>
    %cst_68 = arith.constant dense<0.000000e+00> : vector<1xf32>
    %458 = vector.multi_reduction <add>, %457, %cst_68 [1, 2, 3] : vector<1x8x2x8xf32> to vector<1xf32>
    %459 = vector.shape_cast %458 : vector<1xf32> to vector<1x1x1x1xf32>
    %460 = vector.extract %459[0, 0, 0, 0] : f32 from vector<1x1x1x1xf32>
    %461 = vector.shape_cast %10 : vector<1x128xf32> to vector<1x1x128xf32>
    %cst_69 = arith.constant dense<0.000000e+00> : vector<1xf32>
    %462 = vector.multi_reduction <add>, %461, %cst_69 [1, 2] : vector<1x1x128xf32> to vector<1xf32>
    %463 = vector.shape_cast %462 : vector<1xf32> to vector<1x1x1xf32>
    %464 = vector.extract %463[0, 0, 0] : f32 from vector<1x1x1xf32>
    %465 = arith.addf %460, %464 : f32
    %466 = vector.shape_cast %455 : vector<2x1xf32> to vector<1x2x1xf32>
    %cst_70 = arith.constant dense<0.000000e+00> : vector<1xf32>
    %467 = vector.multi_reduction <add>, %466, %cst_70 [1, 2] : vector<1x2x1xf32> to vector<1xf32>
    %468 = vector.shape_cast %467 : vector<1xf32> to vector<1x1x1xf32>
    %469 = vector.extract %468[0, 0, 0] : f32 from vector<1x1x1xf32>
    %470 = arith.subf %469, %465 : f32
    %cst_71 = arith.constant 2.000000e+00 : f32
    %471 = arith.divf %470, %cst_71 : f32
    %472 = vector.broadcast %471 : f32 to vector<1x1xf32>
    %c0_72 = arith.constant 0 : index
    %c0_73 = arith.constant 0 : index
    %473 = vector.load %arg4[%c0_72, %c0_73] : memref<1x1xf32, #tpu.memory_space<vmem>>, vector<1x1xf32>
    tpu.vector_store %arg4[%c0_72, %c0_73], %472 {strides = array<i32>} : memref<1x1xf32, #tpu.memory_space<vmem>>, vector<1x1xf32>,
    return
  }
  func.func @transform_0(%arg0: i32) -> (i32, i32, i32) {
    %c0_i32 = arith.constant 0 : i32
    %c0_i32_0 = arith.constant 0 : i32
    %c0_i32_1 = arith.constant 0 : i32
    %c0_i32_2 = arith.constant 0 : i32
    return %c0_i32, %c0_i32_0, %c0_i32_1 : i32, i32, i32
  }
  func.func @transform_1(%arg0: i32) -> (i32, i32) {
    %c0_i32 = arith.constant 0 : i32
    %c0_i32_0 = arith.constant 0 : i32
    %c0_i32_1 = arith.constant 0 : i32
    return %c0_i32, %c0_i32_0 : i32, i32
  }
  func.func @transform_2(%arg0: i32) -> (i32, i32, i32) {
    %c0_i32 = arith.constant 0 : i32
    %c0_i32_0 = arith.constant 0 : i32
    %c0_i32_1 = arith.constant 0 : i32
    %c0_i32_2 = arith.constant 0 : i32
    return %c0_i32, %c0_i32_0, %c0_i32_1 : i32, i32, i32
  }
  func.func @transform_3(%arg0: i32) -> (i32, i32) {
    %c0_i32 = arith.constant 0 : i32
    %c0_i32_0 = arith.constant 0 : i32
    %c0_i32_1 = arith.constant 0 : i32
    return %c0_i32, %c0_i32_0 : i32, i32
  }
}

</mosaic_0001>

<llo_original>
// kernel: ner_forward.1
$region0: #{ner_forward.1}
  #allocation0 [shape = 'u32[]', space=smem, size = 0x4, offset = 0x4, fixed_abs, tag = 'smem constant byte address 0x4 - core index']
  #allocation1 [shape = 'u32[144,128]{1,0:T(1,128)}', space=vmem, size = 0x12000, scoped, tag = 'internal scratch']
  %s0 = inlined_call_operand.vmem [shape: f32[8,4,32], index: 0, kind: input, shape index: {}]
  %s1 = inlined_call_operand.vmem [shape: f32[96,128], index: 1, kind: input, shape index: {}]
  %s2 = inlined_call_operand.vmem [shape: f32[8,2,8], index: 2, kind: input, shape index: {}]
  %s3 = inlined_call_operand.hbm [shape: f32[1,1], index: 3, kind: output, shape index: {}]
  %s4 = sld [smem:[#allocation0]]
  $region22: #{ner_forward.1} parent=0
    _
  %s6 = ssub.s32 1, %s4
  %s7 = scalar_select 0, %s6, %s4
  $region1: #{ner_forward.1} parent=0
    #allocation2 [shape = 'u8[512]{0}', space=vmem, size = 0x400, scoped, tag = 'output window, operand 0, single buffered']
    #allocation3 [shape = 's32[1]{0}', space=sflag, size = 0x4, scoped, tag = 'scoped memory for ner_forward.1']
    %8 = vsyncpa [#allocation3], 0
    // Predicated region
    $region2: #{ner_forward.1} parent=1 // pred_check
      _
    $region3: #{ner_forward.1} parent=1 // pred_check_branch
      %10 = sbr.rel (0) target = $region5
    $region4: #{ner_forward.1} parent=1 // pred_region
      _
    $region5: #{ner_forward.1} parent=1 // pred_fallthru
      _
    // Predicated region
    $region6: #{ner_forward.1} parent=1 // pred_check
      _
    $region7: #{ner_forward.1} parent=1 // pred_check_branch
      %12 = sbr.rel (0) target = $region9
    $region8: #{ner_forward.1} parent=1 // pred_region
      _
    $region9: #{ner_forward.1} parent=1 // pred_fallthru
      _
    // Predicated region
    $region10: #{ner_forward.1} parent=1 // pred_check
      _
    $region11: #{ner_forward.1} parent=1 // pred_check_branch
      %14 = sbr.rel (0) target = $region13
    $region12: #{ner_forward.1} parent=1 // pred_region
      _
    $region13: #{ner_forward.1} parent=1 // pred_fallthru
      _
    %v15 = vld [vmem:[%s1] sm:$0xff]
    %v16 = vld [vmem:[%s1 + $0x8] sm:$0xff]
    %v17 = vld [vmem:[%s1 + $0x10] sm:$0xff]
    %v18 = vld [vmem:[%s1 + $0x18] sm:$0xff]
    %v19 = vld [vmem:[%s1 + $0x20] sm:$0xff]
    %v20 = vld [vmem:[%s1 + $0x28] sm:$0xff]
    %v21 = vld [vmem:[%s1 + $0x30] sm:$0x1]
    %v22 = vld [vmem:[%s1 + $0x31] sm:$0x1]
    %v23 = vld [vmem:[%s1 + $0x32] sm:$0x1]
    %v24 = vld [vmem:[%s1 + $0x33] sm:$0xff]
    %v25 = vld [vmem:[%s1 + $0x3b] sm:$0xff]
    %v26 = vld [vmem:[%s1 + $0x43] sm:$0xff]
    %v27 = vld [vmem:[%s1 + $0x4b] sm:$0xff]
    %v28 = vld [vmem:[%s1 + $0x53] sm:$0x1]
    %v29 = vld [vmem:[%s1 + $0x54] sm:$0xff]
    %v30 = vld [vmem:[%s1 + $0x5c] sm:$0x1]
    %v31 = vld [vmem:[%s1 + $0x5d] sm:$0x1]
    %v32 = vld [vmem:[%s1 + $0x5e] sm:$0x1]
    %v33 = vld [vmem:[%s0] sm:$0xf]
    %v34 = vld [vmem:[%s0 + $0x4] sm:$0xf]
    %v35 = vld [vmem:[%s0 + $0x8] sm:$0xf]
    %v36 = vld [vmem:[%s0 + $0xc] sm:$0xf]
    %v37 = vld [vmem:[%s0 + $0x10] sm:$0xf]
    %v38 = vld [vmem:[%s0 + $0x14] sm:$0xf]
    %v39 = vld [vmem:[%s0 + $0x18] sm:$0xf]
    %v40 = vld [vmem:[%s0 + $0x1c] sm:$0xf]
    %vm41 = vcmask 257024
    %v42 = vsel %vm41, %v33, 0.0
    %43 = vadd.xlane.f32.xlu0 %v42
    %v44 = vpop.xlane.xlu0 %43
    %v45 = vsel %vm41, %v34, 0.0
    %46 = vadd.xlane.f32.xlu0 %v45
    %v47 = vpop.xlane.xlu0 %46
    %v48 = vsel %vm41, %v35, 0.0
    %49 = vadd.xlane.f32.xlu0 %v48
    %v50 = vpop.xlane.xlu0 %49
    %v51 = vsel %vm41, %v36, 0.0
    %52 = vadd.xlane.f32.xlu0 %v51
    %v53 = vpop.xlane.xlu0 %52
    %v54 = vsel %vm41, %v37, 0.0
    %55 = vadd.xlane.f32.xlu0 %v54
    %v56 = vpop.xlane.xlu0 %55
    %v57 = vsel %vm41, %v38, 0.0
    %58 = vadd.xlane.f32.xlu0 %v57
    %v59 = vpop.xlane.xlu0 %58
    %v60 = vsel %vm41, %v39, 0.0
    %61 = vadd.xlane.f32.xlu0 %v60
    %v62 = vpop.xlane.xlu0 %61
    %v63 = vsel %vm41, %v40, 0.0
    %64 = vadd.xlane.f32.xlu0 %v63
    %v65 = vpop.xlane.xlu0 %64
    %v66 = vrcp.pop 32.0
    %v67 = vmul.f32 %v44, %v66
    %v68 = vmul.f32 %v47, %v66
    %v69 = vmul.f32 %v50, %v66
    %v70 = vmul.f32 %v53, %v66
    %v71 = vmul.f32 %v56, %v66
    %v72 = vmul.f32 %v59, %v66
    %v73 = vmul.f32 %v62, %v66
    %v74 = vmul.f32 %v65, %v66
    %v75 = vsub.f32 %v33, %v67
    %v76 = vsub.f32 %v34, %v68
    %v77 = vsub.f32 %v35, %v69
    %v78 = vsub.f32 %v36, %v70
    %v79 = vsub.f32 %v37, %v71
    %v80 = vsub.f32 %v38, %v72
    %v81 = vsub.f32 %v39, %v73
    %v82 = vsub.f32 %v40, %v74
    %v83 = vmul.f32 %v75, %v75
    %v84 = vmul.f32 %v76, %v76
    %v85 = vmul.f32 %v77, %v77
    %v86 = vmul.f32 %v78, %v78
    %v87 = vmul.f32 %v79, %v79
    %v88 = vmul.f32 %v80, %v80
    %v89 = vmul.f32 %v81, %v81
    %v90 = vmul.f32 %v82, %v82
    %v91 = vsel %vm41, %v83, 0.0
    %92 = vadd.xlane.f32.xlu0 %v91
    %v93 = vpop.xlane.xlu0 %92
    %v94 = vsel %vm41, %v84, 0.0
    %95 = vadd.xlane.f32.xlu0 %v94
    %v96 = vpop.xlane.xlu0 %95
    %v97 = vsel %vm41, %v85, 0.0
    %98 = vadd.xlane.f32.xlu0 %v97
    %v99 = vpop.xlane.xlu0 %98
    %v100 = vsel %vm41, %v86, 0.0
    %101 = vadd.xlane.f32.xlu0 %v100
    %v102 = vpop.xlane.xlu0 %101
    %v103 = vsel %vm41, %v87, 0.0
    %104 = vadd.xlane.f32.xlu0 %v103
    %v105 = vpop.xlane.xlu0 %104
    %v106 = vsel %vm41, %v88, 0.0
    %107 = vadd.xlane.f32.xlu0 %v106
    %v108 = vpop.xlane.xlu0 %107
    %v109 = vsel %vm41, %v89, 0.0
    %110 = vadd.xlane.f32.xlu0 %v109
    %v111 = vpop.xlane.xlu0 %110
    %v112 = vsel %vm41, %v90, 0.0
    %113 = vadd.xlane.f32.xlu0 %v112
    %v114 = vpop.xlane.xlu0 %113
    %v115 = vmul.f32 %v93, %v66
    %v116 = vmul.f32 %v96, %v66
    %v117 = vmul.f32 %v99, %v66
    %v118 = vmul.f32 %v102, %v66
    %v119 = vmul.f32 %v105, %v66
    %v120 = vmul.f32 %v108, %v66
    %v121 = vmul.f32 %v111, %v66
    %v122 = vmul.f32 %v114, %v66
    %v123 = vadd.f32 %v115, 1e-12
    %v124 = vadd.f32 %v116, 1e-12
    %v125 = vadd.f32 %v117, 1e-12
    %v126 = vadd.f32 %v118, 1e-12
    %v127 = vadd.f32 %v119, 1e-12
    %v128 = vadd.f32 %v120, 1e-12
    %v129 = vadd.f32 %v121, 1e-12
    %v130 = vadd.f32 %v122, 1e-12
    %v131 = vrsqrt.pop %v123
    %v132 = vrsqrt.pop %v124
    %v133 = vrsqrt.pop %v125
    %v134 = vrsqrt.pop %v126
    %v135 = vrsqrt.pop %v127
    %v136 = vrsqrt.pop %v128
    %v137 = vrsqrt.pop %v129
    %v138 = vrsqrt.pop %v130
    %v139 = vmul.f32 %v75, %v131
    %v140 = vmul.f32 %v76, %v132
    %v141 = vmul.f32 %v77, %v133
    %v142 = vmul.f32 %v78, %v134
    %v143 = vmul.f32 %v79, %v135
    %v144 = vmul.f32 %v80, %v136
    %v145 = vmul.f32 %v81, %v137
    %v146 = vmul.f32 %v82, %v138
    %v147 = vlaneseq
    %v148 = vshrl.u32 %v147, 7
    %v149 = vsub.s32 0, %v148
    %v150 = vrot.slane %v22, %v149
    %v151 = vmul.f32 %v139, %v150
    %v152 = vmul.f32 %v140, %v150
    %v153 = vmul.f32 %v141, %v150
    %v154 = vmul.f32 %v142, %v150
    %v155 = vmul.f32 %v143, %v150
    %v156 = vmul.f32 %v144, %v150
    %v157 = vmul.f32 %v145, %v150
    %v158 = vmul.f32 %v146, %v150
    %v159 = vlaneseq
    %v160 = vshrl.u32 %v159, 7
    %v161 = vsub.s32 0, %v160
    %v162 = vrot.slane %v23, %v161
    %v163 = vadd.f32 %v151, %v162
    %v164 = vadd.f32 %v152, %v162
    %v165 = vadd.f32 %v153, %v162
    %v166 = vadd.f32 %v154, %v162
    %v167 = vadd.f32 %v155, %v162
    %v168 = vadd.f32 %v156, %v162
    %v169 = vadd.f32 %v157, %v162
    %v170 = vadd.f32 %v158, %v162
    %v171 = vlaneseq
    %v172 = vshrl.u32 %v171, 7
    %v173 = vsub.s32 0, %v172
    %v174 = vrot.slane %v21, %v173
    %v183 = vcombine.low %v163, %v164
    %v184 = vcombine.low %v165, %v166
    %v185 = vcombine.low %v167, %v168
    %v186 = vcombine.low %v169, %v170
    %v188 = vcombine.low %v174, %v174
    %vm190 = vcmask 261120
    %v191 = vsel %vm190, %v183, 0
    %v193 = vsel %vm190, %v184, 0
    %v195 = vsel %vm190, %v185, 0
    %v197 = vsel %vm190, %v186, 0
    %199 = vmatprep.subr.mxu0 0.0
    %200 = vmatpush1.msra.mxu0 0.0
    %201 = vmatprep.subr.mxu0 0.0
    %202 = vmatpush1.msra.mxu0 0.0
    %203 = vmatprep.subr.mxu0 0.0
    %204 = vmatpush1.msra.mxu0 0.0
    %205 = vmatprep.subr.mxu0 0.0
    %206 = vmatpush1.msra.mxu0 0.0
    %207 = vmatprep.subr.mxu0 0.0
    %208 = vmatpush1.msra.mxu0 0.0
    %209 = vmatprep.subr.mxu0 0.0
    %210 = vmatpush1.msra.mxu0 0.0
    %211 = vmatprep.subr.mxu0 0.0
    %212 = vmatpush1.msra.mxu0 0.0
    %213 = vmatprep.subr.mxu0 0.0
    %214 = vmatpush1.msra.mxu0 0.0
    %215 = vmatprep.subr.mxu0 0.0
    %216 = vmatpush1.msra.mxu0 0.0
    %217 = vmatprep.subr.mxu0 0.0
    %218 = vmatpush1.msra.mxu0 0.0
    %219 = vmatprep.subr.mxu0 0.0
    %220 = vmatpush1.msra.mxu0 0.0
    %221 = vmatprep.subr.mxu0 0.0
    %222 = vmatpush1.msra.mxu0 0.0
    %223 = vmatprep.subr.mxu0 0.0
    %224 = vmatpush1.msra.mxu0 %v18
    %225 = vmatprep.subr.mxu0 0.0
    %226 = vmatpush1.msra.mxu0 %v17
    %227 = vmatprep.subr.mxu0 0.0
    %228 = vmatpush1.msra.mxu0 %v16
    %229 = vmatprep.subr.mxu0 0.0
    %230 = vmatpush1.msra.mxu0 %v15
    %231 = vmatprep.subr.mxu0 0.0
    %232 = vmatpush2.msra.mxu0 0.0
    %233 = vmatprep.subr.mxu0 0.0
    %234 = vmatpush2.msra.mxu0 0.0
    %235 = vmatprep.subr.mxu0 0.0
    %236 = vmatpush2.msra.mxu0 0.0
    %237 = vmatprep.subr.mxu0 0.0
    %238 = vmatpush2.msra.mxu0 0.0
    %239 = vmatprep.subr.mxu0 0.0
    %240 = vmatpush2.msra.mxu0 0.0
    %241 = vmatprep.subr.mxu0 0.0
    %242 = vmatpush2.msra.mxu0 0.0
    %243 = vmatprep.subr.mxu0 0.0
    %244 = vmatpush2.msra.mxu0 0.0
    %245 = vmatprep.subr.mxu0 0.0
    %246 = vmatpush2.msra.mxu0 0.0
    %247 = vmatprep.subr.mxu0 0.0
    %248 = vmatpush2.msra.mxu0 0.0
    %249 = vmatprep.subr.mxu0 0.0
    %250 = vmatpush2.msra.mxu0 0.0
    %251 = vmatprep.subr.mxu0 0.0
    %252 = vmatpush2.msra.mxu0 0.0
    %253 = vmatprep.subr.mxu0 0.0
    %254 = vmatpush2.msra.mxu0 0.0
    %255 = vmatprep.subr.mxu0 0.0
    %256 = vmatpush2.msra.mxu0 0.0
    %257 = vmatprep.subr.mxu0 0.0
    %258 = vmatpush2.msra.mxu0 0.0
    %259 = vmatprep.subr.mxu0 0.0
    %260 = vmatpush2.msra.mxu0 0.0
    %261 = vmatprep.subr.mxu0 0.0
    %262 = vmatpush2.msra.mxu0 0.0
    %263 = vmatprep.mubr.f32.mxu0 0.0
    %264 = vmatmul.mubr.f32.gmra.mxu0 %v191
    %v265 = vpop.f32.mrf.mxu0
    %v266 = vadd.f32 %v188, %v265
    %v267 = vpop.f32.mrf.mxu0
    %268 = vmatprep.mubr.f32.mxu0 0.0
    %269 = vmatmul.mubr.f32.gmra.mxu0 %v193
    %v270 = vpop.f32.mrf.mxu0
    %v271 = vadd.f32 %v188, %v270
    %v272 = vpop.f32.mrf.mxu0
    %273 = vmatprep.mubr.f32.mxu0 0.0
    %274 = vmatmul.mubr.f32.gmra.mxu0 %v195
    %v275 = vpop.f32.mrf.mxu0
    %v276 = vadd.f32 %v188, %v275
    %v277 = vpop.f32.mrf.mxu0
    %278 = vmatprep.mubr.f32.mxu0 0.0
    %279 = vmatmul.mubr.f32.gmra.mxu0 %v197
    %v280 = vpop.f32.mrf.mxu0
    %v281 = vadd.f32 %v188, %v280
    %v282 = vpop.f32.mrf.mxu0
    %283 = vdwg.mxu0
    %v288 = vcombine.high %v266, %v266
    %v289 = vcombine.high %v271, %v271
    %v290 = vcombine.high %v276, %v276
    %v291 = vcombine.high %v281, %v281
    %v296 = vlaneseq
    %v297 = vshrl.u32 %v296, 7
    %vm298 = vcmp.lt.s32.totalorder %v297, 2
    %v299 = vsel %vm298, 1, 0
    %vm300 = vcmp.eq.s32.totalorder %v299, 1
    %301 = vrot.lane.b32.xlu0 %v266, 64
    %v302 = vpop.permute.xlu0 %301
    %303 = vrot.lane.b32.xlu0 %v288, 64
    %v304 = vpop.permute.xlu0 %303
    %305 = vrot.lane.b32.xlu0 %v271, 64
    %v306 = vpop.permute.xlu0 %305
    %307 = vrot.lane.b32.xlu0 %v289, 64
    %v308 = vpop.permute.xlu0 %307
    %309 = vrot.lane.b32.xlu0 %v276, 64
    %v310 = vpop.permute.xlu0 %309
    %311 = vrot.lane.b32.xlu0 %v290, 64
    %v312 = vpop.permute.xlu0 %311
    %313 = vrot.lane.b32.xlu0 %v281, 64
    %v314 = vpop.permute.xlu0 %313
    %315 = vrot.lane.b32.xlu0 %v291, 64
    %v316 = vpop.permute.xlu0 %315
    %v325 = vsel %vm300, %v266, %v302
    %v326 = vsel %vm300, %v288, %v304
    %v327 = vsel %vm300, %v271, %v306
    %v328 = vsel %vm300, %v289, %v308
    %v329 = vsel %vm300, %v276, %v310
    %v330 = vsel %vm300, %v290, %v312
    %v331 = vsel %vm300, %v281, %v314
    %v332 = vsel %vm300, %v291, %v316
    %vm333 = vcmask 130048
    %v335 = vsel %vm333, 0.0, 0
    %337 = vmatprep.subr.mxu0 0.0
    %338 = vmatpush1.msra.mxu0 0.0
    %339 = vmatprep.subr.mxu0 0.0
    %340 = vmatpush1.msra.mxu0 0.0
    %341 = vmatprep.subr.mxu0 0.0
    %342 = vmatpush1.msra.mxu0 0.0
    %343 = vmatprep.subr.mxu0 0.0
    %344 = vmatpush1.msra.mxu0 0.0
    %345 = vmatprep.subr.mxu0 0.0
    %346 = vmatpush1.msra.mxu0 0.0
    %347 = vmatprep.subr.mxu0 0.0
    %348 = vmatpush1.msra.mxu0 0.0
    %349 = vmatprep.subr.mxu0 0.0
    %350 = vmatpush1.msra.mxu0 0.0
    %351 = vmatprep.subr.mxu0 0.0
    %352 = vmatpush1.msra.mxu0 0.0
    %353 = vmatprep.subr.mxu0 0.0
    %354 = vmatpush1.msra.mxu0 0.0
    %355 = vmatprep.subr.mxu0 0.0
    %356 = vmatpush1.msra.mxu0 0.0
    %357 = vmatprep.subr.mxu0 0.0
    %358 = vmatpush1.msra.mxu0 0.0
    %359 = vmatprep.subr.mxu0 0.0
    %360 = vmatpush1.msra.mxu0 0.0
    %361 = vmatprep.subr.mxu0 0.0
    %362 = vmatpush1.msra.mxu0 0.0
    %363 = vmatprep.subr.mxu0 0.0
    %364 = vmatpush1.msra.mxu0 0.0
    %365 = vmatprep.subr.mxu0 0.0
    %366 = vmatpush1.msra.mxu0 %v20
    %367 = vmatprep.subr.mxu0 0.0
    %368 = vmatpush1.msra.mxu0 %v19
    %369 = vmatprep.subr.mxu0 0.0
    %370 = vmatpush2.msra.mxu0 0.0
    %371 = vmatprep.subr.mxu0 0.0
    %372 = vmatpush2.msra.mxu0 0.0
    %373 = vmatprep.subr.mxu0 0.0
    %374 = vmatpush2.msra.mxu0 0.0
    %375 = vmatprep.subr.mxu0 0.0
    %376 = vmatpush2.msra.mxu0 0.0
    %377 = vmatprep.subr.mxu0 0.0
    %378 = vmatpush2.msra.mxu0 0.0
    %379 = vmatprep.subr.mxu0 0.0
    %380 = vmatpush2.msra.mxu0 0.0
    %381 = vmatprep.subr.mxu0 0.0
    %382 = vmatpush2.msra.mxu0 0.0
    %383 = vmatprep.subr.mxu0 0.0
    %384 = vmatpush2.msra.mxu0 0.0
    %385 = vmatprep.subr.mxu0 0.0
    %386 = vmatpush2.msra.mxu0 0.0
    %387 = vmatprep.subr.mxu0 0.0
    %388 = vmatpush2.msra.mxu0 0.0
    %389 = vmatprep.subr.mxu0 0.0
    %390 = vmatpush2.msra.mxu0 0.0
    %391 = vmatprep.subr.mxu0 0.0
    %392 = vmatpush2.msra.mxu0 0.0
    %393 = vmatprep.subr.mxu0 0.0
    %394 = vmatpush2.msra.mxu0 0.0
    %395 = vmatprep.subr.mxu0 0.0
    %396 = vmatpush2.msra.mxu0 0.0
    %397 = vmatprep.subr.mxu0 0.0
    %398 = vmatpush2.msra.mxu0 0.0
    %399 = vmatprep.subr.mxu0 0.0
    %400 = vmatpush2.msra.mxu0 0.0
    %401 = vmatprep.mubr.f32.mxu0 0.0
    %402 = vmatmul.mubr.f32.gmra.mxu0 %v335
    %v403 = vpop.f32.mrf.mxu0
    %v404 = vadd.f32 0.0, %v403
    %v405 = vpop.f32.mrf.mxu0
    %406 = vdwg.mxu0
    %408 = vrot.lane.b32.xlu0 %v404, 64
    %v409 = vpop.permute.xlu0 %408
    %v411 = vsel %vm300, %v404, %v409
    %v412 = vadd.f32 %v325, %v411
    %v413 = vxor.u32 %v412, 2147483648
    %v414 = vmul.f32 %v413, 1.442695
    %v415 = vpow.pop %v414
    %v416 = vadd.f32 %v415, 1.0
    %v417 = vrcp.pop %v416
    %v418 = vmul.f32 1.0, %v417
    %v419 = vtanh.pop %v412
    %v420 = vmul.f32 %v418, 0.0
    %422 = vrot.lane.b32.xlu0 %v419, 80
    %v423 = vpop.permute.xlu0 %422
    %v425 = vmul.f32 %v418, %v423
    %427 = vrot.lane.b32.xlu0 %v425, 16
    %v428 = vpop.permute.xlu0 %427
    %v430 = vadd.f32 %v420, %v428
    %v431 = vtanh.pop %v430
    %433 = vrot.lane.b32.xlu0 %v431, 16
    %v434 = vpop.permute.xlu0 %433
    %v436 = vmul.f32 %v418, %v434
    %438 = vrot.lane.b32.xlu0 %v436, 96
    %v439 = vpop.permute.xlu0 %438
    %v440 = vsel %vm333, %v439, 0
    %442 = vmatprep.subr.mxu0 0.0
    %443 = vmatpush1.msra.mxu0 0.0
    %444 = vmatprep.subr.mxu0 0.0
    %445 = vmatpush1.msra.mxu0 0.0
    %446 = vmatprep.subr.mxu0 0.0
    %447 = vmatpush1.msra.mxu0 0.0
    %448 = vmatprep.subr.mxu0 0.0
    %449 = vmatpush1.msra.mxu0 0.0
    %450 = vmatprep.subr.mxu0 0.0
    %451 = vmatpush1.msra.mxu0 0.0
    %452 = vmatprep.subr.mxu0 0.0
    %453 = vmatpush1.msra.mxu0 0.0
    %454 = vmatprep.subr.mxu0 0.0
    %455 = vmatpush1.msra.mxu0 0.0
    %456 = vmatprep.subr.mxu0 0.0
    %457 = vmatpush1.msra.mxu0 0.0
    %458 = vmatprep.subr.mxu0 0.0
    %459 = vmatpush1.msra.mxu0 0.0
    %460 = vmatprep.subr.mxu0 0.0
    %461 = vmatpush1.msra.mxu0 0.0
    %462 = vmatprep.subr.mxu0 0.0
    %463 = vmatpush1.msra.mxu0 0.0
    %464 = vmatprep.subr.mxu0 0.0
    %465 = vmatpush1.msra.mxu0 0.0
    %466 = vmatprep.subr.mxu0 0.0
    %467 = vmatpush1.msra.mxu0 0.0
    %468 = vmatprep.subr.mxu0 0.0
    %469 = vmatpush1.msra.mxu0 0.0
    %470 = vmatprep.subr.mxu0 0.0
    %471 = vmatpush1.msra.mxu0 %v20
    %472 = vmatprep.subr.mxu0 0.0
    %473 = vmatpush1.msra.mxu0 %v19
    %474 = vmatprep.subr.mxu0 0.0
    %475 = vmatpush2.msra.mxu0 0.0
    %476 = vmatprep.subr.mxu0 0.0
    %477 = vmatpush2.msra.mxu0 0.0
    %478 = vmatprep.subr.mxu0 0.0
    %479 = vmatpush2.msra.mxu0 0.0
    %480 = vmatprep.subr.mxu0 0.0
    %481 = vmatpush2.msra.mxu0 0.0
    %482 = vmatprep.subr.mxu0 0.0
    %483 = vmatpush2.msra.mxu0 0.0
    %484 = vmatprep.subr.mxu0 0.0
    %485 = vmatpush2.msra.mxu0 0.0
    %486 = vmatprep.subr.mxu0 0.0
    %487 = vmatpush2.msra.mxu0 0.0
    %488 = vmatprep.subr.mxu0 0.0
    %489 = vmatpush2.msra.mxu0 0.0
    %490 = vmatprep.subr.mxu0 0.0
    %491 = vmatpush2.msra.mxu0 0.0
    %492 = vmatprep.subr.mxu0 0.0
    %493 = vmatpush2.msra.mxu0 0.0
    %494 = vmatprep.subr.mxu0 0.0
    %495 = vmatpush2.msra.mxu0 0.0
    %496 = vmatprep.subr.mxu0 0.0
    %497 = vmatpush2.msra.mxu0 0.0
    %498 = vmatprep.subr.mxu0 0.0
    %499 = vmatpush2.msra.mxu0 0.0
    %500 = vmatprep.subr.mxu0 0.0
    %501 = vmatpush2.msra.mxu0 0.0
    %502 = vmatprep.subr.mxu0 0.0
    %503 = vmatpush2.msra.mxu0 0.0
    %504 = vmatprep.subr.mxu0 0.0
    %505 = vmatpush2.msra.mxu0 0.0
    %506 = vmatprep.mubr.f32.mxu0 0.0
    %507 = vmatmul.mubr.f32.gmra.mxu0 %v440
    %v508 = vpop.f32.mrf.mxu0
    %v509 = vadd.f32 0.0, %v508
    %v510 = vpop.f32.mrf.mxu0
    %511 = vdwg.mxu0
    %513 = vrot.lane.b32.xlu0 %v509, 64
    %v514 = vpop.permute.xlu0 %513
    %v516 = vsel %vm300, %v509, %v514
    %v517 = vadd.f32 %v326, %v516
    %v518 = vxor.u32 %v517, 2147483648
    %v519 = vmul.f32 %v518, 1.442695
    %v520 = vpow.pop %v519
    %v521 = vadd.f32 %v520, 1.0
    %v522 = vrcp.pop %v521
    %v523 = vmul.f32 1.0, %v522
    %v524 = vtanh.pop %v517
    %v525 = vmul.f32 %v523, %v430
    %527 = vrot.lane.b32.xlu0 %v524, 80
    %v528 = vpop.permute.xlu0 %527
    %v530 = vmul.f32 %v523, %v528
    %532 = vrot.lane.b32.xlu0 %v530, 16
    %v533 = vpop.permute.xlu0 %532
    %v535 = vadd.f32 %v525, %v533
    %v536 = vtanh.pop %v535
    %538 = vrot.lane.b32.xlu0 %v536, 16
    %v539 = vpop.permute.xlu0 %538
    %v541 = vmul.f32 %v523, %v539
    %543 = vrot.lane.b32.xlu0 %v541, 96
    %v544 = vpop.permute.xlu0 %543
    %v545 = vsel %vm333, %v544, 0
    %547 = vmatprep.subr.mxu0 0.0
    %548 = vmatpush1.msra.mxu0 0.0
    %549 = vmatprep.subr.mxu0 0.0
    %550 = vmatpush1.msra.mxu0 0.0
    %551 = vmatprep.subr.mxu0 0.0
    %552 = vmatpush1.msra.mxu0 0.0
    %553 = vmatprep.subr.mxu0 0.0
    %554 = vmatpush1.msra.mxu0 0.0
    %555 = vmatprep.subr.mxu0 0.0
    %556 = vmatpush1.msra.mxu0 0.0
    %557 = vmatprep.subr.mxu0 0.0
    %558 = vmatpush1.msra.mxu0 0.0
    %559 = vmatprep.subr.mxu0 0.0
    %560 = vmatpush1.msra.mxu0 0.0
    %561 = vmatprep.subr.mxu0 0.0
    %562 = vmatpush1.msra.mxu0 0.0
    %563 = vmatprep.subr.mxu0 0.0
    %564 = vmatpush1.msra.mxu0 0.0
    %565 = vmatprep.subr.mxu0 0.0
    %566 = vmatpush1.msra.mxu0 0.0
    %567 = vmatprep.subr.mxu0 0.0
    %568 = vmatpush1.msra.mxu0 0.0
    %569 = vmatprep.subr.mxu0 0.0
    %570 = vmatpush1.msra.mxu0 0.0
    %571 = vmatprep.subr.mxu0 0.0
    %572 = vmatpush1.msra.mxu0 0.0
    %573 = vmatprep.subr.mxu0 0.0
    %574 = vmatpush1.msra.mxu0 0.0
    %575 = vmatprep.subr.mxu0 0.0
    %576 = vmatpush1.msra.mxu0 %v20
    %577 = vmatprep.subr.mxu0 0.0
    %578 = vmatpush1.msra.mxu0 %v19
    %579 = vmatprep.subr.mxu0 0.0
    %580 = vmatpush2.msra.mxu0 0.0
    %581 = vmatprep.subr.mxu0 0.0
    %582 = vmatpush2.msra.mxu0 0.0
    %583 = vmatprep.subr.mxu0 0.0
    %584 = vmatpush2.msra.mxu0 0.0
    %585 = vmatprep.subr.mxu0 0.0
    %586 = vmatpush2.msra.mxu0 0.0
    %587 = vmatprep.subr.mxu0 0.0
    %588 = vmatpush2.msra.mxu0 0.0
    %589 = vmatprep.subr.mxu0 0.0
    %590 = vmatpush2.msra.mxu0 0.0
    %591 = vmatprep.subr.mxu0 0.0
    %592 = vmatpush2.msra.mxu0 0.0
    %593 = vmatprep.subr.mxu0 0.0
    %594 = vmatpush2.msra.mxu0 0.0
    %595 = vmatprep.subr.mxu0 0.0
    %596 = vmatpush2.msra.mxu0 0.0
    %597 = vmatprep.subr.mxu0 0.0
    %598 = vmatpush2.msra.mxu0 0.0
    %599 = vmatprep.subr.mxu0 0.0
    %600 = vmatpush2.msra.mxu0 0.0
    %601 = vmatprep.subr.mxu0 0.0
    %602 = vmatpush2.msra.mxu0 0.0
    %603 = vmatprep.subr.mxu0 0.0
    %604 = vmatpush2.msra.mxu0 0.0
    %605 = vmatprep.subr.mxu0 0.0
    %606 = vmatpush2.msra.mxu0 0.0
    %607 = vmatprep.subr.mxu0 0.0
    %608 = vmatpush2.msra.mxu0 0.0
    %609 = vmatprep.subr.mxu0 0.0
    %610 = vmatpush2.msra.mxu0 0.0
    %611 = vmatprep.mubr.f32.mxu0 0.0
    %612 = vmatmul.mubr.f32.gmra.mxu0 %v545
    %v613 = vpop.f32.mrf.mxu0
    %v614 = vadd.f32 0.0, %v613
    %v615 = vpop.f32.mrf.mxu0
    %616 = vdwg.mxu0
    %618 = vrot.lane.b32.xlu0 %v614, 64
    %v619 = vpop.permute.xlu0 %618
    %v621 = vsel %vm300, %v614, %v619
    %v622 = vadd.f32 %v327, %v621
    %v623 = vxor.u32 %v622, 2147483648
    %v624 = vmul.f32 %v623, 1.442695
    %v625 = vpow.pop %v624
    %v626 = vadd.f32 %v625, 1.0
    %v627 = vrcp.pop %v626
    %v628 = vmul.f32 1.0, %v627
    %v629 = vtanh.pop %v622
    %v630 = vmul.f32 %v628, %v535
    %632 = vrot.lane.b32.xlu0 %v629, 80
    %v633 = vpop.permute.xlu0 %632
    %v635 = vmul.f32 %v628, %v633
    %637 = vrot.lane.b32.xlu0 %v635, 16
    %v638 = vpop.permute.xlu0 %637
    %v640 = vadd.f32 %v630, %v638
    %v641 = vtanh.pop %v640
    %643 = vrot.lane.b32.xlu0 %v641, 16
    %v644 = vpop.permute.xlu0 %643
    %v646 = vmul.f32 %v628, %v644
    %648 = vrot.lane.b32.xlu0 %v646, 96
    %v649 = vpop.permute.xlu0 %648
    %v650 = vsel %vm333, %v649, 0
    %652 = vmatprep.subr.mxu0 0.0
    %653 = vmatpush1.msra.mxu0 0.0
    %654 = vmatprep.subr.mxu0 0.0
    %655 = vmatpush1.msra.mxu0 0.0
    %656 = vmatprep.subr.mxu0 0.0
    %657 = vmatpush1.msra.mxu0 0.0
    %658 = vmatprep.subr.mxu0 0.0
    %659 = vmatpush1.msra.mxu0 0.0
    %660 = vmatprep.subr.mxu0 0.0
    %661 = vmatpush1.msra.mxu0 0.0
    %662 = vmatprep.subr.mxu0 0.0
    %663 = vmatpush1.msra.mxu0 0.0
    %664 = vmatprep.subr.mxu0 0.0
    %665 = vmatpush1.msra.mxu0 0.0
    %666 = vmatprep.subr.mxu0 0.0
    %667 = vmatpush1.msra.mxu0 0.0
    %668 = vmatprep.subr.mxu0 0.0
    %669 = vmatpush1.msra.mxu0 0.0
    %670 = vmatprep.subr.mxu0 0.0
    %671 = vmatpush1.msra.mxu0 0.0
    %672 = vmatprep.subr.mxu0 0.0
    %673 = vmatpush1.msra.mxu0 0.0
    %674 = vmatprep.subr.mxu0 0.0
    %675 = vmatpush1.msra.mxu0 0.0
    %676 = vmatprep.subr.mxu0 0.0
    %677 = vmatpush1.msra.mxu0 0.0
    %678 = vmatprep.subr.mxu0 0.0
    %679 = vmatpush1.msra.mxu0 0.0
    %680 = vmatprep.subr.mxu0 0.0
    %681 = vmatpush1.msra.mxu0 %v20
    %682 = vmatprep.subr.mxu0 0.0
    %683 = vmatpush1.msra.mxu0 %v19
    %684 = vmatprep.subr.mxu0 0.0
    %685 = vmatpush2.msra.mxu0 0.0
    %686 = vmatprep.subr.mxu0 0.0
    %687 = vmatpush2.msra.mxu0 0.0
    %688 = vmatprep.subr.mxu0 0.0
    %689 = vmatpush2.msra.mxu0 0.0
    %690 = vmatprep.subr.mxu0 0.0
    %691 = vmatpush2.msra.mxu0 0.0
    %692 = vmatprep.subr.mxu0 0.0
    %693 = vmatpush2.msra.mxu0 0.0
    %694 = vmatprep.subr.mxu0 0.0
    %695 = vmatpush2.msra.mxu0 0.0
    %696 = vmatprep.subr.mxu0 0.0
    %697 = vmatpush2.msra.mxu0 0.0
    %698 = vmatprep.subr.mxu0 0.0
    %699 = vmatpush2.msra.mxu0 0.0
    %700 = vmatprep.subr.mxu0 0.0
    %701 = vmatpush2.msra.mxu0 0.0
    %702 = vmatprep.subr.mxu0 0.0
    %703 = vmatpush2.msra.mxu0 0.0
    %704 = vmatprep.subr.mxu0 0.0
    %705 = vmatpush2.msra.mxu0 0.0
    %706 = vmatprep.subr.mxu0 0.0
    %707 = vmatpush2.msra.mxu0 0.0
    %708 = vmatprep.subr.mxu0 0.0
    %709 = vmatpush2.msra.mxu0 0.0
    %710 = vmatprep.subr.mxu0 0.0
    %711 = vmatpush2.msra.mxu0 0.0
    %712 = vmatprep.subr.mxu0 0.0
    %713 = vmatpush2.msra.mxu0 0.0
    %714 = vmatprep.subr.mxu0 0.0
    %715 = vmatpush2.msra.mxu0 0.0
    %716 = vmatprep.mubr.f32.mxu0 0.0
    %717 = vmatmul.mubr.f32.gmra.mxu0 %v650
    %v718 = vpop.f32.mrf.mxu0
    %v719 = vadd.f32 0.0, %v718
    %v720 = vpop.f32.mrf.mxu0
    %721 = vdwg.mxu0
    %723 = vrot.lane.b32.xlu0 %v719, 64
    %v724 = vpop.permute.xlu0 %723
    %v726 = vsel %vm300, %v719, %v724
    %v727 = vadd.f32 %v328, %v726
    %v728 = vxor.u32 %v727, 2147483648
    %v729 = vmul.f32 %v728, 1.442695
    %v730 = vpow.pop %v729
    %v731 = vadd.f32 %v730, 1.0
    %v732 = vrcp.pop %v731
    %v733 = vmul.f32 1.0, %v732
    %v734 = vtanh.pop %v727
    %v735 = vmul.f32 %v733, %v640
    %737 = vrot.lane.b32.xlu0 %v734, 80
    %v738 = vpop.permute.xlu0 %737
    %v740 = vmul.f32 %v733, %v738
    %742 = vrot.lane.b32.xlu0 %v740, 16
    %v743 = vpop.permute.xlu0 %742
    %v745 = vadd.f32 %v735, %v743
    %v746 = vtanh.pop %v745
    %748 = vrot.lane.b32.xlu0 %v746, 16
    %v749 = vpop.permute.xlu0 %748
    %v751 = vmul.f32 %v733, %v749
    %753 = vrot.lane.b32.xlu0 %v751, 96
    %v754 = vpop.permute.xlu0 %753
    %v755 = vsel %vm333, %v754, 0
    %757 = vmatprep.subr.mxu0 0.0
    %758 = vmatpush1.msra.mxu0 0.0
    %759 = vmatprep.subr.mxu0 0.0
    %760 = vmatpush1.msra.mxu0 0.0
    %761 = vmatprep.subr.mxu0 0.0
    %762 = vmatpush1.msra.mxu0 0.0
    %763 = vmatprep.subr.mxu0 0.0
    %764 = vmatpush1.msra.mxu0 0.0
    %765 = vmatprep.subr.mxu0 0.0
    %766 = vmatpush1.msra.mxu0 0.0
    %767 = vmatprep.subr.mxu0 0.0
    %768 = vmatpush1.msra.mxu0 0.0
    %769 = vmatprep.subr.mxu0 0.0
    %770 = vmatpush1.msra.mxu0 0.0
    %771 = vmatprep.subr.mxu0 0.0
    %772 = vmatpush1.msra.mxu0 0.0
    %773 = vmatprep.subr.mxu0 0.0
    %774 = vmatpush1.msra.mxu0 0.0
    %775 = vmatprep.subr.mxu0 0.0
    %776 = vmatpush1.msra.mxu0 0.0
    %777 = vmatprep.subr.mxu0 0.0
    %778 = vmatpush1.msra.mxu0 0.0
    %779 = vmatprep.subr.mxu0 0.0
    %780 = vmatpush1.msra.mxu0 0.0
    %781 = vmatprep.subr.mxu0 0.0
    %782 = vmatpush1.msra.mxu0 0.0
    %783 = vmatprep.subr.mxu0 0.0
    %784 = vmatpush1.msra.mxu0 0.0
    %785 = vmatprep.subr.mxu0 0.0
    %786 = vmatpush1.msra.mxu0 %v20
    %787 = vmatprep.subr.mxu0 0.0
    %788 = vmatpush1.msra.mxu0 %v19
    %789 = vmatprep.subr.mxu0 0.0
    %790 = vmatpush2.msra.mxu0 0.0
    %791 = vmatprep.subr.mxu0 0.0
    %792 = vmatpush2.msra.mxu0 0.0
    %793 = vmatprep.subr.mxu0 0.0
    %794 = vmatpush2.msra.mxu0 0.0
    %795 = vmatprep.subr.mxu0 0.0
    %796 = vmatpush2.msra.mxu0 0.0
    %797 = vmatprep.subr.mxu0 0.0
    %798 = vmatpush2.msra.mxu0 0.0
    %799 = vmatprep.subr.mxu0 0.0
    %800 = vmatpush2.msra.mxu0 0.0
    %801 = vmatprep.subr.mxu0 0.0
    %802 = vmatpush2.msra.mxu0 0.0
    %803 = vmatprep.subr.mxu0 0.0
    %804 = vmatpush2.msra.mxu0 0.0
    %805 = vmatprep.subr.mxu0 0.0
    %806 = vmatpush2.msra.mxu0 0.0
    %807 = vmatprep.subr.mxu0 0.0
    %808 = vmatpush2.msra.mxu0 0.0
    %809 = vmatprep.subr.mxu0 0.0
    %810 = vmatpush2.msra.mxu0 0.0
    %811 = vmatprep.subr.mxu0 0.0
    %812 = vmatpush2.msra.mxu0 0.0
    %813 = vmatprep.subr.mxu0 0.0
    %814 = vmatpush2.msra.mxu0 0.0
    %815 = vmatprep.subr.mxu0 0.0
    %816 = vmatpush2.msra.mxu0 0.0
    %817 = vmatprep.subr.mxu0 0.0
    %818 = vmatpush2.msra.mxu0 0.0
    %819 = vmatprep.subr.mxu0 0.0
    %820 = vmatpush2.msra.mxu0 0.0
    %821 = vmatprep.mubr.f32.mxu0 0.0
    %822 = vmatmul.mubr.f32.gmra.mxu0 %v755
    %v823 = vpop.f32.mrf.mxu0
    %v824 = vadd.f32 0.0, %v823
    %v825 = vpop.f32.mrf.mxu0
    %826 = vdwg.mxu0
    %828 = vrot.lane.b32.xlu0 %v824, 64
    %v829 = vpop.permute.xlu0 %828
    %v831 = vsel %vm300, %v824, %v829
    %v832 = vadd.f32 %v329, %v831
    %v833 = vxor.u32 %v832, 2147483648
    %v834 = vmul.f32 %v833, 1.442695
    %v835 = vpow.pop %v834
    %v836 = vadd.f32 %v835, 1.0
    %v837 = vrcp.pop %v836
    %v838 = vmul.f32 1.0, %v837
    %v839 = vtanh.pop %v832
    %v840 = vmul.f32 %v838, %v745
    %842 = vrot.lane.b32.xlu0 %v839, 80
    %v843 = vpop.permute.xlu0 %842
    %v845 = vmul.f32 %v838, %v843
    %847 = vrot.lane.b32.xlu0 %v845, 16
    %v848 = vpop.permute.xlu0 %847
    %v850 = vadd.f32 %v840, %v848
    %v851 = vtanh.pop %v850
    %853 = vrot.lane.b32.xlu0 %v851, 16
    %v854 = vpop.permute.xlu0 %853
    %v856 = vmul.f32 %v838, %v854
    %858 = vrot.lane.b32.xlu0 %v856, 96
    %v859 = vpop.permute.xlu0 %858
    %v860 = vsel %vm333, %v859, 0
    %862 = vmatprep.subr.mxu0 0.0
    %863 = vmatpush1.msra.mxu0 0.0
    %864 = vmatprep.subr.mxu0 0.0
    %865 = vmatpush1.msra.mxu0 0.0
    %866 = vmatprep.subr.mxu0 0.0
    %867 = vmatpush1.msra.mxu0 0.0
    %868 = vmatprep.subr.mxu0 0.0
    %869 = vmatpush1.msra.mxu0 0.0
    %870 = vmatprep.subr.mxu0 0.0
    %871 = vmatpush1.msra.mxu0 0.0
    %872 = vmatprep.subr.mxu0 0.0
    %873 = vmatpush1.msra.mxu0 0.0
    %874 = vmatprep.subr.mxu0 0.0
    %875 = vmatpush1.msra.mxu0 0.0
    %876 = vmatprep.subr.mxu0 0.0
    %877 = vmatpush1.msra.mxu0 0.0
    %878 = vmatprep.subr.mxu0 0.0
    %879 = vmatpush1.msra.mxu0 0.0
    %880 = vmatprep.subr.mxu0 0.0
    %881 = vmatpush1.msra.mxu0 0.0
    %882 = vmatprep.subr.mxu0 0.0
    %883 = vmatpush1.msra.mxu0 0.0
    %884 = vmatprep.subr.mxu0 0.0
    %885 = vmatpush1.msra.mxu0 0.0
    %886 = vmatprep.subr.mxu0 0.0
    %887 = vmatpush1.msra.mxu0 0.0
    %888 = vmatprep.subr.mxu0 0.0
    %889 = vmatpush1.msra.mxu0 0.0
    %890 = vmatprep.subr.mxu0 0.0
    %891 = vmatpush1.msra.mxu0 %v20
    %892 = vmatprep.subr.mxu0 0.0
    %893 = vmatpush1.msra.mxu0 %v19
    %894 = vmatprep.subr.mxu0 0.0
    %895 = vmatpush2.msra.mxu0 0.0
    %896 = vmatprep.subr.mxu0 0.0
    %897 = vmatpush2.msra.mxu0 0.0
    %898 = vmatprep.subr.mxu0 0.0
    %899 = vmatpush2.msra.mxu0 0.0
    %900 = vmatprep.subr.mxu0 0.0
    %901 = vmatpush2.msra.mxu0 0.0
    %902 = vmatprep.subr.mxu0 0.0
    %903 = vmatpush2.msra.mxu0 0.0
    %904 = vmatprep.subr.mxu0 0.0
    %905 = vmatpush2.msra.mxu0 0.0
    %906 = vmatprep.subr.mxu0 0.0
    %907 = vmatpush2.msra.mxu0 0.0
    %908 = vmatprep.subr.mxu0 0.0
    %909 = vmatpush2.msra.mxu0 0.0
    %910 = vmatprep.subr.mxu0 0.0
    %911 = vmatpush2.msra.mxu0 0.0
    %912 = vmatprep.subr.mxu0 0.0
    %913 = vmatpush2.msra.mxu0 0.0
    %914 = vmatprep.subr.mxu0 0.0
    %915 = vmatpush2.msra.mxu0 0.0
    %916 = vmatprep.subr.mxu0 0.0
    %917 = vmatpush2.msra.mxu0 0.0
    %918 = vmatprep.subr.mxu0 0.0
    %919 = vmatpush2.msra.mxu0 0.0
    %920 = vmatprep.subr.mxu0 0.0
    %921 = vmatpush2.msra.mxu0 0.0
    %922 = vmatprep.subr.mxu0 0.0
    %923 = vmatpush2.msra.mxu0 0.0
    %924 = vmatprep.subr.mxu0 0.0
    %925 = vmatpush2.msra.mxu0 0.0
    %926 = vmatprep.mubr.f32.mxu0 0.0
    %927 = vmatmul.mubr.f32.gmra.mxu0 %v860
    %v928 = vpop.f32.mrf.mxu0
    %v929 = vadd.f32 0.0, %v928
    %v930 = vpop.f32.mrf.mxu0
    %931 = vdwg.mxu0
    %933 = vrot.lane.b32.xlu0 %v929, 64
    %v934 = vpop.permute.xlu0 %933
    %v936 = vsel %vm300, %v929, %v934
    %v937 = vadd.f32 %v330, %v936
    %v938 = vxor.u32 %v937, 2147483648
    %v939 = vmul.f32 %v938, 1.442695
    %v940 = vpow.pop %v939
    %v941 = vadd.f32 %v940, 1.0
    %v942 = vrcp.pop %v941
    %v943 = vmul.f32 1.0, %v942
    %v944 = vtanh.pop %v937
    %v945 = vmul.f32 %v943, %v850
    %947 = vrot.lane.b32.xlu0 %v944, 80
    %v948 = vpop.permute.xlu0 %947
    %v950 = vmul.f32 %v943, %v948
    %952 = vrot.lane.b32.xlu0 %v950, 16
    %v953 = vpop.permute.xlu0 %952
    %v955 = vadd.f32 %v945, %v953
    %v956 = vtanh.pop %v955
    %958 = vrot.lane.b32.xlu0 %v956, 16
    %v959 = vpop.permute.xlu0 %958
    %v961 = vmul.f32 %v943, %v959
    %963 = vrot.lane.b32.xlu0 %v961, 96
    %v964 = vpop.permute.xlu0 %963
    %v965 = vsel %vm333, %v964, 0
    %967 = vmatprep.subr.mxu0 0.0
    %968 = vmatpush1.msra.mxu0 0.0
    %969 = vmatprep.subr.mxu0 0.0
    %970 = vmatpush1.msra.mxu0 0.0
    %971 = vmatprep.subr.mxu0 0.0
    %972 = vmatpush1.msra.mxu0 0.0
    %973 = vmatprep.subr.mxu0 0.0
    %974 = vmatpush1.msra.mxu0 0.0
    %975 = vmatprep.subr.mxu0 0.0
    %976 = vmatpush1.msra.mxu0 0.0
    %977 = vmatprep.subr.mxu0 0.0
    %978 = vmatpush1.msra.mxu0 0.0
    %979 = vmatprep.subr.mxu0 0.0
    %980 = vmatpush1.msra.mxu0 0.0
    %981 = vmatprep.subr.mxu0 0.0
    %982 = vmatpush1.msra.mxu0 0.0
    %983 = vmatprep.subr.mxu0 0.0
    %984 = vmatpush1.msra.mxu0 0.0
    %985 = vmatprep.subr.mxu0 0.0
    %986 = vmatpush1.msra.mxu0 0.0
    %987 = vmatprep.subr.mxu0 0.0
    %988 = vmatpush1.msra.mxu0 0.0
    %989 = vmatprep.subr.mxu0 0.0
    %990 = vmatpush1.msra.mxu0 0.0
    %991 = vmatprep.subr.mxu0 0.0
    %992 = vmatpush1.msra.mxu0 0.0
    %993 = vmatprep.subr.mxu0 0.0
    %994 = vmatpush1.msra.mxu0 0.0
    %995 = vmatprep.subr.mxu0 0.0
    %996 = vmatpush1.msra.mxu0 %v20
    %997 = vmatprep.subr.mxu0 0.0
    %998 = vmatpush1.msra.mxu0 %v19
    %999 = vmatprep.subr.mxu0 0.0
    %1000 = vmatpush2.msra.mxu0 0.0
    %1001 = vmatprep.subr.mxu0 0.0
    %1002 = vmatpush2.msra.mxu0 0.0
    %1003 = vmatprep.subr.mxu0 0.0
    %1004 = vmatpush2.msra.mxu0 0.0
    %1005 = vmatprep.subr.mxu0 0.0
    %1006 = vmatpush2.msra.mxu0 0.0
    %1007 = vmatprep.subr.mxu0 0.0
    %1008 = vmatpush2.msra.mxu0 0.0
    %1009 = vmatprep.subr.mxu0 0.0
    %1010 = vmatpush2.msra.mxu0 0.0
    %1011 = vmatprep.subr.mxu0 0.0
    %1012 = vmatpush2.msra.mxu0 0.0
    %1013 = vmatprep.subr.mxu0 0.0
    %1014 = vmatpush2.msra.mxu0 0.0
    %1015 = vmatprep.subr.mxu0 0.0
    %1016 = vmatpush2.msra.mxu0 0.0
    %1017 = vmatprep.subr.mxu0 0.0
    %1018 = vmatpush2.msra.mxu0 0.0
    %1019 = vmatprep.subr.mxu0 0.0
    %1020 = vmatpush2.msra.mxu0 0.0
    %1021 = vmatprep.subr.mxu0 0.0
    %1022 = vmatpush2.msra.mxu0 0.0
    %1023 = vmatprep.subr.mxu0 0.0
    %1024 = vmatpush2.msra.mxu0 0.0
    %1025 = vmatprep.subr.mxu0 0.0
    %1026 = vmatpush2.msra.mxu0 0.0
    %1027 = vmatprep.subr.mxu0 0.0
    %1028 = vmatpush2.msra.mxu0 0.0
    %1029 = vmatprep.subr.mxu0 0.0
    %1030 = vmatpush2.msra.mxu0 0.0
    %1031 = vmatprep.mubr.f32.mxu0 0.0
    %1032 = vmatmul.mubr.f32.gmra.mxu0 %v965
    %v1033 = vpop.f32.mrf.mxu0
    %v1034 = vadd.f32 0.0, %v1033
    %v1035 = vpop.f32.mrf.mxu0
    %1036 = vdwg.mxu0
    %1038 = vrot.lane.b32.xlu0 %v1034, 64
    %v1039 = vpop.permute.xlu0 %1038
    %v1041 = vsel %vm300, %v1034, %v1039
    %v1042 = vadd.f32 %v331, %v1041
    %v1043 = vxor.u32 %v1042, 2147483648
    %v1044 = vmul.f32 %v1043, 1.442695
    %v1045 = vpow.pop %v1044
    %v1046 = vadd.f32 %v1045, 1.0
    %v1047 = vrcp.pop %v1046
    %v1048 = vmul.f32 1.0, %v1047
    %v1049 = vtanh.pop %v1042
    %v1050 = vmul.f32 %v1048, %v955
    %1052 = vrot.lane.b32.xlu0 %v1049, 80
    %v1053 = vpop.permute.xlu0 %1052
    %v1055 = vmul.f32 %v1048, %v1053
    %1057 = vrot.lane.b32.xlu0 %v1055, 16
    %v1058 = vpop.permute.xlu0 %1057
    %v1060 = vadd.f32 %v1050, %v1058
    %v1061 = vtanh.pop %v1060
    %1063 = vrot.lane.b32.xlu0 %v1061, 16
    %v1064 = vpop.permute.xlu0 %1063
    %v1066 = vmul.f32 %v1048, %v1064
    %1068 = vrot.lane.b32.xlu0 %v1066, 96
    %v1069 = vpop.permute.xlu0 %1068
    %v1070 = vsel %vm333, %v1069, 0
    %1072 = vmatprep.subr.mxu0 0.0
    %1073 = vmatpush1.msra.mxu0 0.0
    %1074 = vmatprep.subr.mxu0 0.0
    %1075 = vmatpush1.msra.mxu0 0.0
    %1076 = vmatprep.subr.mxu0 0.0
    %1077 = vmatpush1.msra.mxu0 0.0
    %1078 = vmatprep.subr.mxu0 0.0
    %1079 = vmatpush1.msra.mxu0 0.0
    %1080 = vmatprep.subr.mxu0 0.0
    %1081 = vmatpush1.msra.mxu0 0.0
    %1082 = vmatprep.subr.mxu0 0.0
    %1083 = vmatpush1.msra.mxu0 0.0
    %1084 = vmatprep.subr.mxu0 0.0
    %1085 = vmatpush1.msra.mxu0 0.0
    %1086 = vmatprep.subr.mxu0 0.0
    %1087 = vmatpush1.msra.mxu0 0.0
    %1088 = vmatprep.subr.mxu0 0.0
    %1089 = vmatpush1.msra.mxu0 0.0
    %1090 = vmatprep.subr.mxu0 0.0
    %1091 = vmatpush1.msra.mxu0 0.0
    %1092 = vmatprep.subr.mxu0 0.0
    %1093 = vmatpush1.msra.mxu0 0.0
    %1094 = vmatprep.subr.mxu0 0.0
    %1095 = vmatpush1.msra.mxu0 0.0
    %1096 = vmatprep.subr.mxu0 0.0
    %1097 = vmatpush1.msra.mxu0 0.0
    %1098 = vmatprep.subr.mxu0 0.0
    %1099 = vmatpush1.msra.mxu0 0.0
    %1100 = vmatprep.subr.mxu0 0.0
    %1101 = vmatpush1.msra.mxu0 %v20
    %1102 = vmatprep.subr.mxu0 0.0
    %1103 = vmatpush1.msra.mxu0 %v19
    %1104 = vmatprep.subr.mxu0 0.0
    %1105 = vmatpush2.msra.mxu0 0.0
    %1106 = vmatprep.subr.mxu0 0.0
    %1107 = vmatpush2.msra.mxu0 0.0
    %1108 = vmatprep.subr.mxu0 0.0
    %1109 = vmatpush2.msra.mxu0 0.0
    %1110 = vmatprep.subr.mxu0 0.0
    %1111 = vmatpush2.msra.mxu0 0.0
    %1112 = vmatprep.subr.mxu0 0.0
    %1113 = vmatpush2.msra.mxu0 0.0
    %1114 = vmatprep.subr.mxu0 0.0
    %1115 = vmatpush2.msra.mxu0 0.0
    %1116 = vmatprep.subr.mxu0 0.0
    %1117 = vmatpush2.msra.mxu0 0.0
    %1118 = vmatprep.subr.mxu0 0.0
    %1119 = vmatpush2.msra.mxu0 0.0
    %1120 = vmatprep.subr.mxu0 0.0
    %1121 = vmatpush2.msra.mxu0 0.0
    %1122 = vmatprep.subr.mxu0 0.0
    %1123 = vmatpush2.msra.mxu0 0.0
    %1124 = vmatprep.subr.mxu0 0.0
    %1125 = vmatpush2.msra.mxu0 0.0
    %1126 = vmatprep.subr.mxu0 0.0
    %1127 = vmatpush2.msra.mxu0 0.0
    %1128 = vmatprep.subr.mxu0 0.0
    %1129 = vmatpush2.msra.mxu0 0.0
    %1130 = vmatprep.subr.mxu0 0.0
    %1131 = vmatpush2.msra.mxu0 0.0
    %1132 = vmatprep.subr.mxu0 0.0
    %1133 = vmatpush2.msra.mxu0 0.0
    %1134 = vmatprep.subr.mxu0 0.0
    %1135 = vmatpush2.msra.mxu0 0.0
    %1136 = vmatprep.mubr.f32.mxu0 0.0
    %1137 = vmatmul.mubr.f32.gmra.mxu0 %v1070
    %v1138 = vpop.f32.mrf.mxu0
    %v1139 = vadd.f32 0.0, %v1138
    %v1140 = vpop.f32.mrf.mxu0
    %1141 = vdwg.mxu0
    %1143 = vrot.lane.b32.xlu0 %v1139, 64
    %v1144 = vpop.permute.xlu0 %1143
    %v1146 = vsel %vm300, %v1139, %v1144
    %v1147 = vadd.f32 %v332, %v1146
    %v1148 = vxor.u32 %v1147, 2147483648
    %v1149 = vmul.f32 %v1148, 1.442695
    %v1150 = vpow.pop %v1149
    %v1151 = vadd.f32 %v1150, 1.0
    %v1152 = vrcp.pop %v1151
    %v1153 = vmul.f32 1.0, %v1152
    %v1154 = vtanh.pop %v1147
    %v1155 = vmul.f32 %v1153, %v1060
    %1157 = vrot.lane.b32.xlu0 %v1154, 80
    %v1158 = vpop.permute.xlu0 %1157
    %v1160 = vmul.f32 %v1153, %v1158
    %1162 = vrot.lane.b32.xlu0 %v1160, 16
    %v1163 = vpop.permute.xlu0 %1162
    %v1165 = vadd.f32 %v1155, %v1163
    %v1166 = vtanh.pop %v1165
    %1168 = vrot.lane.b32.xlu0 %v1166, 16
    %v1169 = vpop.permute.xlu0 %1168
    %v1171 = vmul.f32 %v1153, %v1169
    %1173 = vrot.lane.b32.xlu0 %v1171, 96
    %v1174 = vpop.permute.xlu0 %1173
    %v1183 = vrot.slane %v1171, 2
    %v1184 = vrot.slane %v1066, 2
    %v1185 = vrot.slane %v961, 2
    %v1186 = vrot.slane %v856, 2
    %v1187 = vrot.slane %v751, 2
    %v1188 = vrot.slane %v646, 2
    %v1189 = vrot.slane %v541, 2
    %v1190 = vrot.slane %v436, 2
    %1191 = vrot.lane.b32.xlu0 %v1183, 112
    %v1192 = vpop.permute.xlu0 %1191
    %1193 = vrot.lane.b32.xlu0 %v1184, 112
    %v1194 = vpop.permute.xlu0 %1193
    %1195 = vrot.lane.b32.xlu0 %v1185, 112
    %v1196 = vpop.permute.xlu0 %1195
    %1197 = vrot.lane.b32.xlu0 %v1186, 112
    %v1198 = vpop.permute.xlu0 %1197
    %1199 = vrot.lane.b32.xlu0 %v1187, 112
    %v1200 = vpop.permute.xlu0 %1199
    %1201 = vrot.lane.b32.xlu0 %v1188, 112
    %v1202 = vpop.permute.xlu0 %1201
    %1203 = vrot.lane.b32.xlu0 %v1189, 112
    %v1204 = vpop.permute.xlu0 %1203
    %1205 = vrot.lane.b32.xlu0 %v1190, 112
    %v1206 = vpop.permute.xlu0 %1205
    %v1215 = vsel %vm333, %v439, %v1192
    %v1216 = vsel %vm333, %v544, %v1194
    %v1217 = vsel %vm333, %v649, %v1196
    %v1218 = vsel %vm333, %v754, %v1198
    %v1219 = vsel %vm333, %v859, %v1200
    %v1220 = vsel %vm333, %v964, %v1202
    %v1221 = vsel %vm333, %v1069, %v1204
    %v1222 = vsel %vm333, %v1174, %v1206
    %v1223 = vlaneseq
    %v1224 = vshrl.u32 %v1223, 7
    %v1225 = vsub.s32 0, %v1224
    %v1226 = vrot.slane %v28, %v1225
    %v1235 = vcombine.low %v1215, %v1216
    %v1236 = vcombine.low %v1217, %v1218
    %v1238 = vunpack.c.l.s4 1983009808
    %v1239 = vunpack.c.0.s8 %v1238
    %v1240 = vlaneseq
    %v1241 = vshrl.u32 %v1240, 7
    %v1242 = vsub.s32 %v1239, %v1241
    %v1243 = vrot.slane %v1235, %v1242
    %v1245 = vunpack.c.l.s4 1983009808
    %v1246 = vunpack.c.0.s8 %v1245
    %v1247 = vlaneseq
    %v1248 = vshrl.u32 %v1247, 7
    %v1249 = vsub.s32 %v1246, %v1248
    %v1250 = vrot.slane %v1236, %v1249
    %v1251 = vcombine.low %v1243, %v1250
    %v1252 = vcombine.low %v1219, %v1220
    %v1253 = vcombine.low %v1221, %v1222
    %v1255 = vunpack.c.l.s4 1983009808
    %v1256 = vunpack.c.0.s8 %v1255
    %v1257 = vlaneseq
    %v1258 = vshrl.u32 %v1257, 7
    %v1259 = vsub.s32 %v1256, %v1258
    %v1260 = vrot.slane %v1252, %v1259
    %v1262 = vunpack.c.l.s4 1983009808
    %v1263 = vunpack.c.0.s8 %v1262
    %v1264 = vlaneseq
    %v1265 = vshrl.u32 %v1264, 7
    %v1266 = vsub.s32 %v1263, %v1265
    %v1267 = vrot.slane %v1253, %v1266
    %v1268 = vcombine.low %v1260, %v1267
    %v1270 = vcombine.low %v1226, %v1226
    %v1272 = vunpack.c.l.s4 1983009808
    %v1273 = vunpack.c.0.s8 %v1272
    %v1274 = vlaneseq
    %v1275 = vshrl.u32 %v1274, 7
    %v1276 = vsub.s32 %v1273, %v1275
    %v1277 = vrot.slane %v1270, %v1276
    %v1278 = vcombine.low %v1277, %v1277
    %v1280 = vsel %vm190, %v1251, 0
    %v1282 = vsel %vm190, %v1268, 0
    %1284 = vmatprep.subr.mxu0 0.0
    %1285 = vmatpush1.msra.mxu0 0.0
    %1286 = vmatprep.subr.mxu0 0.0
    %1287 = vmatpush1.msra.mxu0 0.0
    %1288 = vmatprep.subr.mxu0 0.0
    %1289 = vmatpush1.msra.mxu0 0.0
    %1290 = vmatprep.subr.mxu0 0.0
    %1291 = vmatpush1.msra.mxu0 0.0
    %1292 = vmatprep.subr.mxu0 0.0
    %1293 = vmatpush1.msra.mxu0 0.0
    %1294 = vmatprep.subr.mxu0 0.0
    %1295 = vmatpush1.msra.mxu0 0.0
    %1296 = vmatprep.subr.mxu0 0.0
    %1297 = vmatpush1.msra.mxu0 0.0
    %1298 = vmatprep.subr.mxu0 0.0
    %1299 = vmatpush1.msra.mxu0 0.0
    %1300 = vmatprep.subr.mxu0 0.0
    %1301 = vmatpush1.msra.mxu0 0.0
    %1302 = vmatprep.subr.mxu0 0.0
    %1303 = vmatpush1.msra.mxu0 0.0
    %1304 = vmatprep.subr.mxu0 0.0
    %1305 = vmatpush1.msra.mxu0 0.0
    %1306 = vmatprep.subr.mxu0 0.0
    %1307 = vmatpush1.msra.mxu0 0.0
    %1308 = vmatprep.subr.mxu0 0.0
    %1309 = vmatpush1.msra.mxu0 %v27
    %1310 = vmatprep.subr.mxu0 0.0
    %1311 = vmatpush1.msra.mxu0 %v26
    %1312 = vmatprep.subr.mxu0 0.0
    %1313 = vmatpush1.msra.mxu0 %v25
    %1314 = vmatprep.subr.mxu0 0.0
    %1315 = vmatpush1.msra.mxu0 %v24
    %1316 = vmatprep.subr.mxu0 0.0
    %1317 = vmatpush2.msra.mxu0 0.0
    %1318 = vmatprep.subr.mxu0 0.0
    %1319 = vmatpush2.msra.mxu0 0.0
    %1320 = vmatprep.subr.mxu0 0.0
    %1321 = vmatpush2.msra.mxu0 0.0
    %1322 = vmatprep.subr.mxu0 0.0
    %1323 = vmatpush2.msra.mxu0 0.0
    %1324 = vmatprep.subr.mxu0 0.0
    %1325 = vmatpush2.msra.mxu0 0.0
    %1326 = vmatprep.subr.mxu0 0.0
    %1327 = vmatpush2.msra.mxu0 0.0
    %1328 = vmatprep.subr.mxu0 0.0
    %1329 = vmatpush2.msra.mxu0 0.0
    %1330 = vmatprep.subr.mxu0 0.0
    %1331 = vmatpush2.msra.mxu0 0.0
    %1332 = vmatprep.subr.mxu0 0.0
    %1333 = vmatpush2.msra.mxu0 0.0
    %1334 = vmatprep.subr.mxu0 0.0
    %1335 = vmatpush2.msra.mxu0 0.0
    %1336 = vmatprep.subr.mxu0 0.0
    %1337 = vmatpush2.msra.mxu0 0.0
    %1338 = vmatprep.subr.mxu0 0.0
    %1339 = vmatpush2.msra.mxu0 0.0
    %1340 = vmatprep.subr.mxu0 0.0
    %1341 = vmatpush2.msra.mxu0 0.0
    %1342 = vmatprep.subr.mxu0 0.0
    %1343 = vmatpush2.msra.mxu0 0.0
    %1344 = vmatprep.subr.mxu0 0.0
    %1345 = vmatpush2.msra.mxu0 0.0
    %1346 = vmatprep.subr.mxu0 0.0
    %1347 = vmatpush2.msra.mxu0 0.0
    %1348 = vmatprep.mubr.f32.mxu0 0.0
    %1349 = vmatmul.mubr.f32.gmra.mxu0 %v1280
    %v1350 = vpop.f32.mrf.mxu0
    %v1351 = vadd.f32 %v1278, %v1350
    %v1352 = vpop.f32.mrf.mxu0
    %1353 = vmatprep.mubr.f32.mxu0 0.0
    %1354 = vmatmul.mubr.f32.gmra.mxu0 %v1282
    %v1355 = vpop.f32.mrf.mxu0
    %v1356 = vadd.f32 %v1278, %v1355
    %v1357 = vpop.f32.mrf.mxu0
    %1358 = vdwg.mxu0
    %v1361 = vcombine.high %v1351, %v1351
    %v1363 = vunpack.c.l.s4 1983009808
    %v1364 = vunpack.c.0.s8 %v1363
    %v1365 = vlaneseq
    %v1366 = vshrl.u32 %v1365, 7
    %v1367 = vsub.s32 %v1364, %v1366
    %v1368 = vrot.slane %v1351, %v1367
    %v1370 = vunpack.c.l.s4 1983009808
    %v1371 = vunpack.c.0.s8 %v1370
    %v1372 = vlaneseq
    %v1373 = vshrl.u32 %v1372, 7
    %v1374 = vsub.s32 %v1371, %v1373
    %v1375 = vrot.slane %v1361, %v1374
    %v1376 = vcombine.high %v1368, %v1368
    %v1377 = vcombine.high %v1375, %v1375
    %v1378 = vcombine.high %v1356, %v1356
    %v1380 = vunpack.c.l.s4 1983009808
    %v1381 = vunpack.c.0.s8 %v1380
    %v1382 = vlaneseq
    %v1383 = vshrl.u32 %v1382, 7
    %v1384 = vsub.s32 %v1381, %v1383
    %v1385 = vrot.slane %v1356, %v1384
    %v1387 = vunpack.c.l.s4 1983009808
    %v1388 = vunpack.c.0.s8 %v1387
    %v1389 = vlaneseq
    %v1390 = vshrl.u32 %v1389, 7
    %v1391 = vsub.s32 %v1388, %v1390
    %v1392 = vrot.slane %v1378, %v1391
    %v1393 = vcombine.high %v1385, %v1385
    %v1394 = vcombine.high %v1392, %v1392
    %vm1403 = vcmask 58368
    %v1404 = vsel %vm1403, %v1368, -inf
    %1405 = vmax.xlane.f32.xlu0 %v1404
    %v1406 = vpop.xlane.xlu0 %1405
    %v1407 = vsel %vm1403, %v1376, -inf
    %1408 = vmax.xlane.f32.xlu0 %v1407
    %v1409 = vpop.xlane.xlu0 %1408
    %v1410 = vsel %vm1403, %v1375, -inf
    %1411 = vmax.xlane.f32.xlu0 %v1410
    %v1412 = vpop.xlane.xlu0 %1411
    %v1413 = vsel %vm1403, %v1377, -inf
    %1414 = vmax.xlane.f32.xlu0 %v1413
    %v1415 = vpop.xlane.xlu0 %1414
    %v1416 = vsel %vm1403, %v1385, -inf
    %1417 = vmax.xlane.f32.xlu0 %v1416
    %v1418 = vpop.xlane.xlu0 %1417
    %v1419 = vsel %vm1403, %v1393, -inf
    %1420 = vmax.xlane.f32.xlu0 %v1419
    %v1421 = vpop.xlane.xlu0 %1420
    %v1422 = vsel %vm1403, %v1392, -inf
    %1423 = vmax.xlane.f32.xlu0 %v1422
    %v1424 = vpop.xlane.xlu0 %1423
    %v1425 = vsel %vm1403, %v1394, -inf
    %1426 = vmax.xlane.f32.xlu0 %v1425
    %v1427 = vpop.xlane.xlu0 %1426
    %v1428 = vsub.f32 %v1368, %v1406
    %v1429 = vsub.f32 %v1376, %v1409
    %v1430 = vsub.f32 %v1375, %v1412
    %v1431 = vsub.f32 %v1377, %v1415
    %v1432 = vsub.f32 %v1385, %v1418
    %v1433 = vsub.f32 %v1393, %v1421
    %v1434 = vsub.f32 %v1392, %v1424
    %v1435 = vsub.f32 %v1394, %v1427
    %v1436 = vmul.f32 %v1428, 1.442695
    %v1437 = vpow.pop %v1436
    %v1438 = vmul.f32 %v1429, 1.442695
    %v1439 = vpow.pop %v1438
    %v1440 = vmul.f32 %v1430, 1.442695
    %v1441 = vpow.pop %v1440
    %v1442 = vmul.f32 %v1431, 1.442695
    %v1443 = vpow.pop %v1442
    %v1444 = vmul.f32 %v1432, 1.442695
    %v1445 = vpow.pop %v1444
    %v1446 = vmul.f32 %v1433, 1.442695
    %v1447 = vpow.pop %v1446
    %v1448 = vmul.f32 %v1434, 1.442695
    %v1449 = vpow.pop %v1448
    %v1450 = vmul.f32 %v1435, 1.442695
    %v1451 = vpow.pop %v1450
    %v1452 = vsel %vm1403, %v1437, 0.0
    %1453 = vadd.xlane.f32.xlu0 %v1452
    %v1454 = vpop.xlane.xlu0 %1453
    %v1455 = vsel %vm1403, %v1439, 0.0
    %1456 = vadd.xlane.f32.xlu0 %v1455
    %v1457 = vpop.xlane.xlu0 %1456
    %v1458 = vsel %vm1403, %v1441, 0.0
    %1459 = vadd.xlane.f32.xlu0 %v1458
    %v1460 = vpop.xlane.xlu0 %1459
    %v1461 = vsel %vm1403, %v1443, 0.0
    %1462 = vadd.xlane.f32.xlu0 %v1461
    %v1463 = vpop.xlane.xlu0 %1462
    %v1464 = vsel %vm1403, %v1445, 0.0
    %1465 = vadd.xlane.f32.xlu0 %v1464
    %v1466 = vpop.xlane.xlu0 %1465
    %v1467 = vsel %vm1403, %v1447, 0.0
    %1468 = vadd.xlane.f32.xlu0 %v1467
    %v1469 = vpop.xlane.xlu0 %1468
    %v1470 = vsel %vm1403, %v1449, 0.0
    %1471 = vadd.xlane.f32.xlu0 %v1470
    %v1472 = vpop.xlane.xlu0 %1471
    %v1473 = vsel %vm1403, %v1451, 0.0
    %1474 = vadd.xlane.f32.xlu0 %v1473
    %v1475 = vpop.xlane.xlu0 %1474
    %v1476 = vlog2.pop %v1454
    %v1477 = vmul.f32 %v1476, 0.6931472
    %v1478 = vlog2.pop %v1457
    %v1479 = vmul.f32 %v1478, 0.6931472
    %v1480 = vlog2.pop %v1460
    %v1481 = vmul.f32 %v1480, 0.6931472
    %v1482 = vlog2.pop %v1463
    %v1483 = vmul.f32 %v1482, 0.6931472
    %v1484 = vlog2.pop %v1466
    %v1485 = vmul.f32 %v1484, 0.6931472
    %v1486 = vlog2.pop %v1469
    %v1487 = vmul.f32 %v1486, 0.6931472
    %v1488 = vlog2.pop %v1472
    %v1489 = vmul.f32 %v1488, 0.6931472
    %v1490 = vlog2.pop %v1475
    %v1491 = vmul.f32 %v1490, 0.6931472
    %v1492 = vsub.f32 %v1428, %v1477
    %v1493 = vsub.f32 %v1429, %v1479
    %v1494 = vsub.f32 %v1430, %v1481
    %v1495 = vsub.f32 %v1431, %v1483
    %v1496 = vsub.f32 %v1432, %v1485
    %v1497 = vsub.f32 %v1433, %v1487
    %v1498 = vsub.f32 %v1434, %v1489
    %v1499 = vsub.f32 %v1435, %v1491
    %v1500 = vld [vmem:[%s2] sm:$0x3]
    %v1501 = vld [vmem:[%s2 + $0x2] sm:$0x3]
    %v1502 = vld [vmem:[%s2 + $0x4] sm:$0x3]
    %v1503 = vld [vmem:[%s2 + $0x6] sm:$0x3]
    %v1504 = vld [vmem:[%s2 + $0x8] sm:$0x3]
    %v1505 = vld [vmem:[%s2 + $0xa] sm:$0x3]
    %v1506 = vld [vmem:[%s2 + $0xc] sm:$0x3]
    %v1507 = vld [vmem:[%s2 + $0xe] sm:$0x3]
    %v1508 = vsel %vm1403, %v1501, 0.0
    %1509 = vadd.xlane.f32.xlu0 %v1508
    %v1510 = vpop.xlane.xlu0 %1509
    %v1511 = vsel %vm1403, %v1502, 0.0
    %1512 = vadd.xlane.f32.xlu0 %v1511
    %v1513 = vpop.xlane.xlu0 %1512
    %v1514 = vsel %vm1403, %v1503, 0.0
    %1515 = vadd.xlane.f32.xlu0 %v1514
    %v1516 = vpop.xlane.xlu0 %1515
    %v1517 = vsel %vm1403, %v1504, 0.0
    %1518 = vadd.xlane.f32.xlu0 %v1517
    %v1519 = vpop.xlane.xlu0 %1518
    %v1520 = vsel %vm1403, %v1505, 0.0
    %1521 = vadd.xlane.f32.xlu0 %v1520
    %v1522 = vpop.xlane.xlu0 %1521
    %v1523 = vsel %vm1403, %v1506, 0.0
    %1524 = vadd.xlane.f32.xlu0 %v1523
    %v1525 = vpop.xlane.xlu0 %1524
    %v1526 = vsel %vm1403, %v1507, 0.0
    %1527 = vadd.xlane.f32.xlu0 %v1526
    %v1528 = vpop.xlane.xlu0 %1527
    %v1529 = vmul.f32 %v29, 1.442695
    %v1530 = vpow.pop %v1529
    %v1531 = vlaneseq
    %v1532 = vshrl.u32 %v1531, 7
    %v1533 = vsub.s32 0, %v1532
    %v1534 = vrot.slane %v30, %v1533
    %v1535 = vadd.f32 %v1492, %v1534
    %v1536 = vsel %vm1403, %v1535, -inf
    %1537 = vmax.xlane.f32.xlu0 %v1536
    %v1538 = vpop.xlane.xlu0 %1537
    %v1539 = vadd.f32 %v1493, %v1538
    %v1540 = vsub.f32 %v1535, %v1538
    %v1541 = vmul.f32 %v1540, 1.442695
    %v1542 = vpow.pop %v1541
    %vm1543 = vcmask 64512
    %v1545 = vsel %vm1543, %v1542, 0
    %1547 = vmatprep.subr.mxu0 0.0
    %1548 = vmatpush1.msra.mxu0 0.0
    %1549 = vmatprep.subr.mxu0 0.0
    %1550 = vmatpush1.msra.mxu0 0.0
    %1551 = vmatprep.subr.mxu0 0.0
    %1552 = vmatpush1.msra.mxu0 0.0
    %1553 = vmatprep.subr.mxu0 0.0
    %1554 = vmatpush1.msra.mxu0 0.0
    %1555 = vmatprep.subr.mxu0 0.0
    %1556 = vmatpush1.msra.mxu0 0.0
    %1557 = vmatprep.subr.mxu0 0.0
    %1558 = vmatpush1.msra.mxu0 0.0
    %1559 = vmatprep.subr.mxu0 0.0
    %1560 = vmatpush1.msra.mxu0 0.0
    %1561 = vmatprep.subr.mxu0 0.0
    %1562 = vmatpush1.msra.mxu0 0.0
    %1563 = vmatprep.subr.mxu0 0.0
    %1564 = vmatpush1.msra.mxu0 0.0
    %1565 = vmatprep.subr.mxu0 0.0
    %1566 = vmatpush1.msra.mxu0 0.0
    %1567 = vmatprep.subr.mxu0 0.0
    %1568 = vmatpush1.msra.mxu0 0.0
    %1569 = vmatprep.subr.mxu0 0.0
    %1570 = vmatpush1.msra.mxu0 0.0
    %1571 = vmatprep.subr.mxu0 0.0
    %1572 = vmatpush1.msra.mxu0 0.0
    %1573 = vmatprep.subr.mxu0 0.0
    %1574 = vmatpush1.msra.mxu0 0.0
    %1575 = vmatprep.subr.mxu0 0.0
    %1576 = vmatpush1.msra.mxu0 0.0
    %1577 = vmatprep.subr.mxu0 0.0
    %1578 = vmatpush1.msra.mxu0 %v1530
    %1579 = vmatprep.subr.mxu0 0.0
    %1580 = vmatpush2.msra.mxu0 0.0
    %1581 = vmatprep.subr.mxu0 0.0
    %1582 = vmatpush2.msra.mxu0 0.0
    %1583 = vmatprep.subr.mxu0 0.0
    %1584 = vmatpush2.msra.mxu0 0.0
    %1585 = vmatprep.subr.mxu0 0.0
    %1586 = vmatpush2.msra.mxu0 0.0
    %1587 = vmatprep.subr.mxu0 0.0
    %1588 = vmatpush2.msra.mxu0 0.0
    %1589 = vmatprep.subr.mxu0 0.0
    %1590 = vmatpush2.msra.mxu0 0.0
    %1591 = vmatprep.subr.mxu0 0.0
    %1592 = vmatpush2.msra.mxu0 0.0
    %1593 = vmatprep.subr.mxu0 0.0
    %1594 = vmatpush2.msra.mxu0 0.0
    %1595 = vmatprep.subr.mxu0 0.0
    %1596 = vmatpush2.msra.mxu0 0.0
    %1597 = vmatprep.subr.mxu0 0.0
    %1598 = vmatpush2.msra.mxu0 0.0
    %1599 = vmatprep.subr.mxu0 0.0
    %1600 = vmatpush2.msra.mxu0 0.0
    %1601 = vmatprep.subr.mxu0 0.0
    %1602 = vmatpush2.msra.mxu0 0.0
    %1603 = vmatprep.subr.mxu0 0.0
    %1604 = vmatpush2.msra.mxu0 0.0
    %1605 = vmatprep.subr.mxu0 0.0
    %1606 = vmatpush2.msra.mxu0 0.0
    %1607 = vmatprep.subr.mxu0 0.0
    %1608 = vmatpush2.msra.mxu0 0.0
    %1609 = vmatprep.subr.mxu0 0.0
    %1610 = vmatpush2.msra.mxu0 0.0
    %1611 = vmatprep.mubr.f32.mxu0 0.0
    %1612 = vmatmul.mubr.f32.gmra.mxu0 %v1545
    %v1613 = vpop.f32.mrf.mxu0
    %v1614 = vadd.f32 0.0, %v1613
    %v1615 = vpop.f32.mrf.mxu0
    %1616 = vdwg.mxu0
    %v1617 = vlog2.pop %v1614
    %v1618 = vmul.f32 %v1617, 0.6931472
    %v1619 = vadd.f32 %v1539, %v1618
    %vm1620 = vcmp.gt.f32.partialorder %v1510, 0.0
    %v1621 = vsel %vm1620, 1, 0
    %vm1622 = vcmp.eq.s32.totalorder %v1621, 1
    %v1623 = vsel %vm1622, %v1619, %v1535
    %v1624 = vsel %vm1403, %v1623, -inf
    %1625 = vmax.xlane.f32.xlu0 %v1624
    %v1626 = vpop.xlane.xlu0 %1625
    %v1627 = vadd.f32 %v1494, %v1626
    %v1628 = vsub.f32 %v1623, %v1626
    %v1629 = vmul.f32 %v1628, 1.442695
    %v1630 = vpow.pop %v1629
    %v1632 = vsel %vm1543, %v1630, 0
    %1634 = vmatprep.subr.mxu0 0.0
    %1635 = vmatpush1.msra.mxu0 0.0
    %1636 = vmatprep.subr.mxu0 0.0
    %1637 = vmatpush1.msra.mxu0 0.0
    %1638 = vmatprep.subr.mxu0 0.0
    %1639 = vmatpush1.msra.mxu0 0.0
    %1640 = vmatprep.subr.mxu0 0.0
    %1641 = vmatpush1.msra.mxu0 0.0
    %1642 = vmatprep.subr.mxu0 0.0
    %1643 = vmatpush1.msra.mxu0 0.0
    %1644 = vmatprep.subr.mxu0 0.0
    %1645 = vmatpush1.msra.mxu0 0.0
    %1646 = vmatprep.subr.mxu0 0.0
    %1647 = vmatpush1.msra.mxu0 0.0
    %1648 = vmatprep.subr.mxu0 0.0
    %1649 = vmatpush1.msra.mxu0 0.0
    %1650 = vmatprep.subr.mxu0 0.0
    %1651 = vmatpush1.msra.mxu0 0.0
    %1652 = vmatprep.subr.mxu0 0.0
    %1653 = vmatpush1.msra.mxu0 0.0
    %1654 = vmatprep.subr.mxu0 0.0
    %1655 = vmatpush1.msra.mxu0 0.0
    %1656 = vmatprep.subr.mxu0 0.0
    %1657 = vmatpush1.msra.mxu0 0.0
    %1658 = vmatprep.subr.mxu0 0.0
    %1659 = vmatpush1.msra.mxu0 0.0
    %1660 = vmatprep.subr.mxu0 0.0
    %1661 = vmatpush1.msra.mxu0 0.0
    %1662 = vmatprep.subr.mxu0 0.0
    %1663 = vmatpush1.msra.mxu0 0.0
    %1664 = vmatprep.subr.mxu0 0.0
    %1665 = vmatpush1.msra.mxu0 %v1530
    %1666 = vmatprep.subr.mxu0 0.0
    %1667 = vmatpush2.msra.mxu0 0.0
    %1668 = vmatprep.subr.mxu0 0.0
    %1669 = vmatpush2.msra.mxu0 0.0
    %1670 = vmatprep.subr.mxu0 0.0
    %1671 = vmatpush2.msra.mxu0 0.0
    %1672 = vmatprep.subr.mxu0 0.0
    %1673 = vmatpush2.msra.mxu0 0.0
    %1674 = vmatprep.subr.mxu0 0.0
    %1675 = vmatpush2.msra.mxu0 0.0
    %1676 = vmatprep.subr.mxu0 0.0
    %1677 = vmatpush2.msra.mxu0 0.0
    %1678 = vmatprep.subr.mxu0 0.0
    %1679 = vmatpush2.msra.mxu0 0.0
    %1680 = vmatprep.subr.mxu0 0.0
    %1681 = vmatpush2.msra.mxu0 0.0
    %1682 = vmatprep.subr.mxu0 0.0
    %1683 = vmatpush2.msra.mxu0 0.0
    %1684 = vmatprep.subr.mxu0 0.0
    %1685 = vmatpush2.msra.mxu0 0.0
    %1686 = vmatprep.subr.mxu0 0.0
    %1687 = vmatpush2.msra.mxu0 0.0
    %1688 = vmatprep.subr.mxu0 0.0
    %1689 = vmatpush2.msra.mxu0 0.0
    %1690 = vmatprep.subr.mxu0 0.0
    %1691 = vmatpush2.msra.mxu0 0.0
    %1692 = vmatprep.subr.mxu0 0.0
    %1693 = vmatpush2.msra.mxu0 0.0
    %1694 = vmatprep.subr.mxu0 0.0
    %1695 = vmatpush2.msra.mxu0 0.0
    %1696 = vmatprep.subr.mxu0 0.0
    %1697 = vmatpush2.msra.mxu0 0.0
    %1698 = vmatprep.mubr.f32.mxu0 0.0
    %1699 = vmatmul.mubr.f32.gmra.mxu0 %v1632
    %v1700 = vpop.f32.mrf.mxu0
    %v1701 = vadd.f32 0.0, %v1700
    %v1702 = vpop.f32.mrf.mxu0
    %1703 = vdwg.mxu0
    %v1704 = vlog2.pop %v1701
    %v1705 = vmul.f32 %v1704, 0.6931472
    %v1706 = vadd.f32 %v1627, %v1705
    %vm1707 = vcmp.gt.f32.partialorder %v1513, 0.0
    %v1708 = vsel %vm1707, 1, 0
    %vm1709 = vcmp.eq.s32.totalorder %v1708, 1
    %v1710 = vsel %vm1709, %v1706, %v1623
    %v1711 = vsel %vm1403, %v1710, -inf
    %1712 = vmax.xlane.f32.xlu0 %v1711
    %v1713 = vpop.xlane.xlu0 %1712
    %v1714 = vadd.f32 %v1495, %v1713
    %v1715 = vsub.f32 %v1710, %v1713
    %v1716 = vmul.f32 %v1715, 1.442695
    %v1717 = vpow.pop %v1716
    %v1719 = vsel %vm1543, %v1717, 0
    %1721 = vmatprep.subr.mxu0 0.0
    %1722 = vmatpush1.msra.mxu0 0.0
    %1723 = vmatprep.subr.mxu0 0.0
    %1724 = vmatpush1.msra.mxu0 0.0
    %1725 = vmatprep.subr.mxu0 0.0
    %1726 = vmatpush1.msra.mxu0 0.0
    %1727 = vmatprep.subr.mxu0 0.0
    %1728 = vmatpush1.msra.mxu0 0.0
    %1729 = vmatprep.subr.mxu0 0.0
    %1730 = vmatpush1.msra.mxu0 0.0
    %1731 = vmatprep.subr.mxu0 0.0
    %1732 = vmatpush1.msra.mxu0 0.0
    %1733 = vmatprep.subr.mxu0 0.0
    %1734 = vmatpush1.msra.mxu0 0.0
    %1735 = vmatprep.subr.mxu0 0.0
    %1736 = vmatpush1.msra.mxu0 0.0
    %1737 = vmatprep.subr.mxu0 0.0
    %1738 = vmatpush1.msra.mxu0 0.0
    %1739 = vmatprep.subr.mxu0 0.0
    %1740 = vmatpush1.msra.mxu0 0.0
    %1741 = vmatprep.subr.mxu0 0.0
    %1742 = vmatpush1.msra.mxu0 0.0
    %1743 = vmatprep.subr.mxu0 0.0
    %1744 = vmatpush1.msra.mxu0 0.0
    %1745 = vmatprep.subr.mxu0 0.0
    %1746 = vmatpush1.msra.mxu0 0.0
    %1747 = vmatprep.subr.mxu0 0.0
    %1748 = vmatpush1.msra.mxu0 0.0
    %1749 = vmatprep.subr.mxu0 0.0
    %1750 = vmatpush1.msra.mxu0 0.0
    %1751 = vmatprep.subr.mxu0 0.0
    %1752 = vmatpush1.msra.mxu0 %v1530
    %1753 = vmatprep.subr.mxu0 0.0
    %1754 = vmatpush2.msra.mxu0 0.0
    %1755 = vmatprep.subr.mxu0 0.0
    %1756 = vmatpush2.msra.mxu0 0.0
    %1757 = vmatprep.subr.mxu0 0.0
    %1758 = vmatpush2.msra.mxu0 0.0
    %1759 = vmatprep.subr.mxu0 0.0
    %1760 = vmatpush2.msra.mxu0 0.0
    %1761 = vmatprep.subr.mxu0 0.0
    %1762 = vmatpush2.msra.mxu0 0.0
    %1763 = vmatprep.subr.mxu0 0.0
    %1764 = vmatpush2.msra.mxu0 0.0
    %1765 = vmatprep.subr.mxu0 0.0
    %1766 = vmatpush2.msra.mxu0 0.0
    %1767 = vmatprep.subr.mxu0 0.0
    %1768 = vmatpush2.msra.mxu0 0.0
    %1769 = vmatprep.subr.mxu0 0.0
    %1770 = vmatpush2.msra.mxu0 0.0
    %1771 = vmatprep.subr.mxu0 0.0
    %1772 = vmatpush2.msra.mxu0 0.0
    %1773 = vmatprep.subr.mxu0 0.0
    %1774 = vmatpush2.msra.mxu0 0.0
    %1775 = vmatprep.subr.mxu0 0.0
    %1776 = vmatpush2.msra.mxu0 0.0
    %1777 = vmatprep.subr.mxu0 0.0
    %1778 = vmatpush2.msra.mxu0 0.0
    %1779 = vmatprep.subr.mxu0 0.0
    %1780 = vmatpush2.msra.mxu0 0.0
    %1781 = vmatprep.subr.mxu0 0.0
    %1782 = vmatpush2.msra.mxu0 0.0
    %1783 = vmatprep.subr.mxu0 0.0
    %1784 = vmatpush2.msra.mxu0 0.0
    %1785 = vmatprep.mubr.f32.mxu0 0.0
    %1786 = vmatmul.mubr.f32.gmra.mxu0 %v1719
    %v1787 = vpop.f32.mrf.mxu0
    %v1788 = vadd.f32 0.0, %v1787
    %v1789 = vpop.f32.mrf.mxu0
    %1790 = vdwg.mxu0
    %v1791 = vlog2.pop %v1788
    %v1792 = vmul.f32 %v1791, 0.6931472
    %v1793 = vadd.f32 %v1714, %v1792
    %vm1794 = vcmp.gt.f32.partialorder %v1516, 0.0
    %v1795 = vsel %vm1794, 1, 0
    %vm1796 = vcmp.eq.s32.totalorder %v1795, 1
    %v1797 = vsel %vm1796, %v1793, %v1710
    %v1798 = vsel %vm1403, %v1797, -inf
    %1799 = vmax.xlane.f32.xlu0 %v1798
    %v1800 = vpop.xlane.xlu0 %1799
    %v1801 = vadd.f32 %v1496, %v1800
    %v1802 = vsub.f32 %v1797, %v1800
    %v1803 = vmul.f32 %v1802, 1.442695
    %v1804 = vpow.pop %v1803
    %v1806 = vsel %vm1543, %v1804, 0
    %1808 = vmatprep.subr.mxu0 0.0
    %1809 = vmatpush1.msra.mxu0 0.0
    %1810 = vmatprep.subr.mxu0 0.0
    %1811 = vmatpush1.msra.mxu0 0.0
    %1812 = vmatprep.subr.mxu0 0.0
    %1813 = vmatpush1.msra.mxu0 0.0
    %1814 = vmatprep.subr.mxu0 0.0
    %1815 = vmatpush1.msra.mxu0 0.0
    %1816 = vmatprep.subr.mxu0 0.0
    %1817 = vmatpush1.msra.mxu0 0.0
    %1818 = vmatprep.subr.mxu0 0.0
    %1819 = vmatpush1.msra.mxu0 0.0
    %1820 = vmatprep.subr.mxu0 0.0
    %1821 = vmatpush1.msra.mxu0 0.0
    %1822 = vmatprep.subr.mxu0 0.0
    %1823 = vmatpush1.msra.mxu0 0.0
    %1824 = vmatprep.subr.mxu0 0.0
    %1825 = vmatpush1.msra.mxu0 0.0
    %1826 = vmatprep.subr.mxu0 0.0
    %1827 = vmatpush1.msra.mxu0 0.0
    %1828 = vmatprep.subr.mxu0 0.0
    %1829 = vmatpush1.msra.mxu0 0.0
    %1830 = vmatprep.subr.mxu0 0.0
    %1831 = vmatpush1.msra.mxu0 0.0
    %1832 = vmatprep.subr.mxu0 0.0
    %1833 = vmatpush1.msra.mxu0 0.0
    %1834 = vmatprep.subr.mxu0 0.0
    %1835 = vmatpush1.msra.mxu0 0.0
    %1836 = vmatprep.subr.mxu0 0.0
    %1837 = vmatpush1.msra.mxu0 0.0
    %1838 = vmatprep.subr.mxu0 0.0
    %1839 = vmatpush1.msra.mxu0 %v1530
    %1840 = vmatprep.subr.mxu0 0.0
    %1841 = vmatpush2.msra.mxu0 0.0
    %1842 = vmatprep.subr.mxu0 0.0
    %1843 = vmatpush2.msra.mxu0 0.0
    %1844 = vmatprep.subr.mxu0 0.0
    %1845 = vmatpush2.msra.mxu0 0.0
    %1846 = vmatprep.subr.mxu0 0.0
    %1847 = vmatpush2.msra.mxu0 0.0
    %1848 = vmatprep.subr.mxu0 0.0
    %1849 = vmatpush2.msra.mxu0 0.0
    %1850 = vmatprep.subr.mxu0 0.0
    %1851 = vmatpush2.msra.mxu0 0.0
    %1852 = vmatprep.subr.mxu0 0.0
    %1853 = vmatpush2.msra.mxu0 0.0
    %1854 = vmatprep.subr.mxu0 0.0
    %1855 = vmatpush2.msra.mxu0 0.0
    %1856 = vmatprep.subr.mxu0 0.0
    %1857 = vmatpush2.msra.mxu0 0.0
    %1858 = vmatprep.subr.mxu0 0.0
    %1859 = vmatpush2.msra.mxu0 0.0
    %1860 = vmatprep.subr.mxu0 0.0
    %1861 = vmatpush2.msra.mxu0 0.0
    %1862 = vmatprep.subr.mxu0 0.0
    %1863 = vmatpush2.msra.mxu0 0.0
    %1864 = vmatprep.subr.mxu0 0.0
    %1865 = vmatpush2.msra.mxu0 0.0
    %1866 = vmatprep.subr.mxu0 0.0
    %1867 = vmatpush2.msra.mxu0 0.0
    %1868 = vmatprep.subr.mxu0 0.0
    %1869 = vmatpush2.msra.mxu0 0.0
    %1870 = vmatprep.subr.mxu0 0.0
    %1871 = vmatpush2.msra.mxu0 0.0
    %1872 = vmatprep.mubr.f32.mxu0 0.0
    %1873 = vmatmul.mubr.f32.gmra.mxu0 %v1806
    %v1874 = vpop.f32.mrf.mxu0
    %v1875 = vadd.f32 0.0, %v1874
    %v1876 = vpop.f32.mrf.mxu0
    %1877 = vdwg.mxu0
    %v1878 = vlog2.pop %v1875
    %v1879 = vmul.f32 %v1878, 0.6931472
    %v1880 = vadd.f32 %v1801, %v1879
    %vm1881 = vcmp.gt.f32.partialorder %v1519, 0.0
    %v1882 = vsel %vm1881, 1, 0
    %vm1883 = vcmp.eq.s32.totalorder %v1882, 1
    %v1884 = vsel %vm1883, %v1880, %v1797
    %v1885 = vsel %vm1403, %v1884, -inf
    %1886 = vmax.xlane.f32.xlu0 %v1885
    %v1887 = vpop.xlane.xlu0 %1886
    %v1888 = vadd.f32 %v1497, %v1887
    %v1889 = vsub.f32 %v1884, %v1887
    %v1890 = vmul.f32 %v1889, 1.442695
    %v1891 = vpow.pop %v1890
    %v1893 = vsel %vm1543, %v1891, 0
    %1895 = vmatprep.subr.mxu0 0.0
    %1896 = vmatpush1.msra.mxu0 0.0
    %1897 = vmatprep.subr.mxu0 0.0
    %1898 = vmatpush1.msra.mxu0 0.0
    %1899 = vmatprep.subr.mxu0 0.0
    %1900 = vmatpush1.msra.mxu0 0.0
    %1901 = vmatprep.subr.mxu0 0.0
    %1902 = vmatpush1.msra.mxu0 0.0
    %1903 = vmatprep.subr.mxu0 0.0
    %1904 = vmatpush1.msra.mxu0 0.0
    %1905 = vmatprep.subr.mxu0 0.0
    %1906 = vmatpush1.msra.mxu0 0.0
    %1907 = vmatprep.subr.mxu0 0.0
    %1908 = vmatpush1.msra.mxu0 0.0
    %1909 = vmatprep.subr.mxu0 0.0
    %1910 = vmatpush1.msra.mxu0 0.0
    %1911 = vmatprep.subr.mxu0 0.0
    %1912 = vmatpush1.msra.mxu0 0.0
    %1913 = vmatprep.subr.mxu0 0.0
    %1914 = vmatpush1.msra.mxu0 0.0
    %1915 = vmatprep.subr.mxu0 0.0
    %1916 = vmatpush1.msra.mxu0 0.0
    %1917 = vmatprep.subr.mxu0 0.0
    %1918 = vmatpush1.msra.mxu0 0.0
    %1919 = vmatprep.subr.mxu0 0.0
    %1920 = vmatpush1.msra.mxu0 0.0
    %1921 = vmatprep.subr.mxu0 0.0
    %1922 = vmatpush1.msra.mxu0 0.0
    %1923 = vmatprep.subr.mxu0 0.0
    %1924 = vmatpush1.msra.mxu0 0.0
    %1925 = vmatprep.subr.mxu0 0.0
    %1926 = vmatpush1.msra.mxu0 %v1530
    %1927 = vmatprep.subr.mxu0 0.0
    %1928 = vmatpush2.msra.mxu0 0.0
    %1929 = vmatprep.subr.mxu0 0.0
    %1930 = vmatpush2.msra.mxu0 0.0
    %1931 = vmatprep.subr.mxu0 0.0
    %1932 = vmatpush2.msra.mxu0 0.0
    %1933 = vmatprep.subr.mxu0 0.0
    %1934 = vmatpush2.msra.mxu0 0.0
    %1935 = vmatprep.subr.mxu0 0.0
    %1936 = vmatpush2.msra.mxu0 0.0
    %1937 = vmatprep.subr.mxu0 0.0
    %1938 = vmatpush2.msra.mxu0 0.0
    %1939 = vmatprep.subr.mxu0 0.0
    %1940 = vmatpush2.msra.mxu0 0.0
    %1941 = vmatprep.subr.mxu0 0.0
    %1942 = vmatpush2.msra.mxu0 0.0
    %1943 = vmatprep.subr.mxu0 0.0
    %1944 = vmatpush2.msra.mxu0 0.0
    %1945 = vmatprep.subr.mxu0 0.0
    %1946 = vmatpush2.msra.mxu0 0.0
    %1947 = vmatprep.subr.mxu0 0.0
    %1948 = vmatpush2.msra.mxu0 0.0
    %1949 = vmatprep.subr.mxu0 0.0
    %1950 = vmatpush2.msra.mxu0 0.0
    %1951 = vmatprep.subr.mxu0 0.0
    %1952 = vmatpush2.msra.mxu0 0.0
    %1953 = vmatprep.subr.mxu0 0.0
    %1954 = vmatpush2.msra.mxu0 0.0
    %1955 = vmatprep.subr.mxu0 0.0
    %1956 = vmatpush2.msra.mxu0 0.0
    %1957 = vmatprep.subr.mxu0 0.0
    %1958 = vmatpush2.msra.mxu0 0.0
    %1959 = vmatprep.mubr.f32.mxu0 0.0
    %1960 = vmatmul.mubr.f32.gmra.mxu0 %v1893
    %v1961 = vpop.f32.mrf.mxu0
    %v1962 = vadd.f32 0.0, %v1961
    %v1963 = vpop.f32.mrf.mxu0
    %1964 = vdwg.mxu0
    %v1965 = vlog2.pop %v1962
    %v1966 = vmul.f32 %v1965, 0.6931472
    %v1967 = vadd.f32 %v1888, %v1966
    %vm1968 = vcmp.gt.f32.partialorder %v1522, 0.0
    %v1969 = vsel %vm1968, 1, 0
    %vm1970 = vcmp.eq.s32.totalorder %v1969, 1
    %v1971 = vsel %vm1970, %v1967, %v1884
    %v1972 = vsel %vm1403, %v1971, -inf
    %1973 = vmax.xlane.f32.xlu0 %v1972
    %v1974 = vpop.xlane.xlu0 %1973
    %v1975 = vadd.f32 %v1498, %v1974
    %v1976 = vsub.f32 %v1971, %v1974
    %v1977 = vmul.f32 %v1976, 1.442695
    %v1978 = vpow.pop %v1977
    %v1980 = vsel %vm1543, %v1978, 0
    %1982 = vmatprep.subr.mxu0 0.0
    %1983 = vmatpush1.msra.mxu0 0.0
    %1984 = vmatprep.subr.mxu0 0.0
    %1985 = vmatpush1.msra.mxu0 0.0
    %1986 = vmatprep.subr.mxu0 0.0
    %1987 = vmatpush1.msra.mxu0 0.0
    %1988 = vmatprep.subr.mxu0 0.0
    %1989 = vmatpush1.msra.mxu0 0.0
    %1990 = vmatprep.subr.mxu0 0.0
    %1991 = vmatpush1.msra.mxu0 0.0
    %1992 = vmatprep.subr.mxu0 0.0
    %1993 = vmatpush1.msra.mxu0 0.0
    %1994 = vmatprep.subr.mxu0 0.0
    %1995 = vmatpush1.msra.mxu0 0.0
    %1996 = vmatprep.subr.mxu0 0.0
    %1997 = vmatpush1.msra.mxu0 0.0
    %1998 = vmatprep.subr.mxu0 0.0
    %1999 = vmatpush1.msra.mxu0 0.0
    %2000 = vmatprep.subr.mxu0 0.0
    %2001 = vmatpush1.msra.mxu0 0.0
    %2002 = vmatprep.subr.mxu0 0.0
    %2003 = vmatpush1.msra.mxu0 0.0
    %2004 = vmatprep.subr.mxu0 0.0
    %2005 = vmatpush1.msra.mxu0 0.0
    %2006 = vmatprep.subr.mxu0 0.0
    %2007 = vmatpush1.msra.mxu0 0.0
    %2008 = vmatprep.subr.mxu0 0.0
    %2009 = vmatpush1.msra.mxu0 0.0
    %2010 = vmatprep.subr.mxu0 0.0
    %2011 = vmatpush1.msra.mxu0 0.0
    %2012 = vmatprep.subr.mxu0 0.0
    %2013 = vmatpush1.msra.mxu0 %v1530
    %2014 = vmatprep.subr.mxu0 0.0
    %2015 = vmatpush2.msra.mxu0 0.0
    %2016 = vmatprep.subr.mxu0 0.0
    %2017 = vmatpush2.msra.mxu0 0.0
    %2018 = vmatprep.subr.mxu0 0.0
    %2019 = vmatpush2.msra.mxu0 0.0
    %2020 = vmatprep.subr.mxu0 0.0
    %2021 = vmatpush2.msra.mxu0 0.0
    %2022 = vmatprep.subr.mxu0 0.0
    %2023 = vmatpush2.msra.mxu0 0.0
    %2024 = vmatprep.subr.mxu0 0.0
    %2025 = vmatpush2.msra.mxu0 0.0
    %2026 = vmatprep.subr.mxu0 0.0
    %2027 = vmatpush2.msra.mxu0 0.0
    %2028 = vmatprep.subr.mxu0 0.0
    %2029 = vmatpush2.msra.mxu0 0.0
    %2030 = vmatprep.subr.mxu0 0.0
    %2031 = vmatpush2.msra.mxu0 0.0
    %2032 = vmatprep.subr.mxu0 0.0
    %2033 = vmatpush2.msra.mxu0 0.0
    %2034 = vmatprep.subr.mxu0 0.0
    %2035 = vmatpush2.msra.mxu0 0.0
    %2036 = vmatprep.subr.mxu0 0.0
    %2037 = vmatpush2.msra.mxu0 0.0
    %2038 = vmatprep.subr.mxu0 0.0
    %2039 = vmatpush2.msra.mxu0 0.0
    %2040 = vmatprep.subr.mxu0 0.0
    %2041 = vmatpush2.msra.mxu0 0.0
    %2042 = vmatprep.subr.mxu0 0.0
    %2043 = vmatpush2.msra.mxu0 0.0
    %2044 = vmatprep.subr.mxu0 0.0
    %2045 = vmatpush2.msra.mxu0 0.0
    %2046 = vmatprep.mubr.f32.mxu0 0.0
    %2047 = vmatmul.mubr.f32.gmra.mxu0 %v1980
    %v2048 = vpop.f32.mrf.mxu0
    %v2049 = vadd.f32 0.0, %v2048
    %v2050 = vpop.f32.mrf.mxu0
    %2051 = vdwg.mxu0
    %v2052 = vlog2.pop %v2049
    %v2053 = vmul.f32 %v2052, 0.6931472
    %v2054 = vadd.f32 %v1975, %v2053
    %vm2055 = vcmp.gt.f32.partialorder %v1525, 0.0
    %v2056 = vsel %vm2055, 1, 0
    %vm2057 = vcmp.eq.s32.totalorder %v2056, 1
    %v2058 = vsel %vm2057, %v2054, %v1971
    %v2059 = vsel %vm1403, %v2058, -inf
    %2060 = vmax.xlane.f32.xlu0 %v2059
    %v2061 = vpop.xlane.xlu0 %2060
    %v2062 = vadd.f32 %v1499, %v2061
    %v2063 = vsub.f32 %v2058, %v2061
    %v2064 = vmul.f32 %v2063, 1.442695
    %v2065 = vpow.pop %v2064
    %v2067 = vsel %vm1543, %v2065, 0
    %2069 = vmatprep.subr.mxu0 0.0
    %2070 = vmatpush1.msra.mxu0 0.0
    %2071 = vmatprep.subr.mxu0 0.0
    %2072 = vmatpush1.msra.mxu0 0.0
    %2073 = vmatprep.subr.mxu0 0.0
    %2074 = vmatpush1.msra.mxu0 0.0
    %2075 = vmatprep.subr.mxu0 0.0
    %2076 = vmatpush1.msra.mxu0 0.0
    %2077 = vmatprep.subr.mxu0 0.0
    %2078 = vmatpush1.msra.mxu0 0.0
    %2079 = vmatprep.subr.mxu0 0.0
    %2080 = vmatpush1.msra.mxu0 0.0
    %2081 = vmatprep.subr.mxu0 0.0
    %2082 = vmatpush1.msra.mxu0 0.0
    %2083 = vmatprep.subr.mxu0 0.0
    %2084 = vmatpush1.msra.mxu0 0.0
    %2085 = vmatprep.subr.mxu0 0.0
    %2086 = vmatpush1.msra.mxu0 0.0
    %2087 = vmatprep.subr.mxu0 0.0
    %2088 = vmatpush1.msra.mxu0 0.0
    %2089 = vmatprep.subr.mxu0 0.0
    %2090 = vmatpush1.msra.mxu0 0.0
    %2091 = vmatprep.subr.mxu0 0.0
    %2092 = vmatpush1.msra.mxu0 0.0
    %2093 = vmatprep.subr.mxu0 0.0
    %2094 = vmatpush1.msra.mxu0 0.0
    %2095 = vmatprep.subr.mxu0 0.0
    %2096 = vmatpush1.msra.mxu0 0.0
    %2097 = vmatprep.subr.mxu0 0.0
    %2098 = vmatpush1.msra.mxu0 0.0
    %2099 = vmatprep.subr.mxu0 0.0
    %2100 = vmatpush1.msra.mxu0 %v1530
    %2101 = vmatprep.subr.mxu0 0.0
    %2102 = vmatpush2.msra.mxu0 0.0
    %2103 = vmatprep.subr.mxu0 0.0
    %2104 = vmatpush2.msra.mxu0 0.0
    %2105 = vmatprep.subr.mxu0 0.0
    %2106 = vmatpush2.msra.mxu0 0.0
    %2107 = vmatprep.subr.mxu0 0.0
    %2108 = vmatpush2.msra.mxu0 0.0
    %2109 = vmatprep.subr.mxu0 0.0
    %2110 = vmatpush2.msra.mxu0 0.0
    %2111 = vmatprep.subr.mxu0 0.0
    %2112 = vmatpush2.msra.mxu0 0.0
    %2113 = vmatprep.subr.mxu0 0.0
    %2114 = vmatpush2.msra.mxu0 0.0
    %2115 = vmatprep.subr.mxu0 0.0
    %2116 = vmatpush2.msra.mxu0 0.0
    %2117 = vmatprep.subr.mxu0 0.0
    %2118 = vmatpush2.msra.mxu0 0.0
    %2119 = vmatprep.subr.mxu0 0.0
    %2120 = vmatpush2.msra.mxu0 0.0
    %2121 = vmatprep.subr.mxu0 0.0
    %2122 = vmatpush2.msra.mxu0 0.0
    %2123 = vmatprep.subr.mxu0 0.0
    %2124 = vmatpush2.msra.mxu0 0.0
    %2125 = vmatprep.subr.mxu0 0.0
    %2126 = vmatpush2.msra.mxu0 0.0
    %2127 = vmatprep.subr.mxu0 0.0
    %2128 = vmatpush2.msra.mxu0 0.0
    %2129 = vmatprep.subr.mxu0 0.0
    %2130 = vmatpush2.msra.mxu0 0.0
    %2131 = vmatprep.subr.mxu0 0.0
    %2132 = vmatpush2.msra.mxu0 0.0
    %2133 = vmatprep.mubr.f32.mxu0 0.0
    %2134 = vmatmul.mubr.f32.gmra.mxu0 %v2067
    %v2135 = vpop.f32.mrf.mxu0
    %v2136 = vadd.f32 0.0, %v2135
    %v2137 = vpop.f32.mrf.mxu0
    %2138 = vdwg.mxu0
    %v2139 = vlog2.pop %v2136
    %v2140 = vmul.f32 %v2139, 0.6931472
    %v2141 = vadd.f32 %v2062, %v2140
    %vm2142 = vcmp.gt.f32.partialorder %v1528, 0.0
    %v2143 = vsel %vm2142, 1, 0
    %vm2144 = vcmp.eq.s32.totalorder %v2143, 1
    %v2145 = vsel %vm2144, %v2141, %v2058
    %v2146 = vlaneseq
    %v2147 = vshrl.u32 %v2146, 7
    %v2148 = vsub.s32 0, %v2147
    %v2149 = vrot.slane %v31, %v2148
    %v2150 = vadd.f32 %v2145, %v2149
    %v2151 = vsel %vm1403, %v2150, -inf
    %2152 = vmax.xlane.f32.xlu0 %v2151
    %v2153 = vpop.xlane.xlu0 %2152
    %v2154 = vsub.f32 %v2150, %v2153
    %v2155 = vmul.f32 %v2154, 1.442695
    %v2156 = vpow.pop %v2155
    %v2157 = vsel %vm1403, %v2156, 0.0
    %2158 = vadd.xlane.f32.xlu0 %v2157
    %v2159 = vpop.xlane.xlu0 %2158
    %v2160 = vlog2.pop %v2159
    %v2161 = vmul.f32 %v2160, 0.6931472
    %v2162 = vadd.f32 %v2153, %v2161
    %v2163 = vmul.f32 %v1492, %v1500
    %v2164 = vmul.f32 %v1493, %v1501
    %v2165 = vmul.f32 %v1494, %v1502
    %v2166 = vmul.f32 %v1495, %v1503
    %v2167 = vmul.f32 %v1496, %v1504
    %v2168 = vmul.f32 %v1497, %v1505
    %v2169 = vmul.f32 %v1498, %v1506
    %v2170 = vmul.f32 %v1499, %v1507
    %v2171 = vsel %vm1403, %v2163, 0.0
    %v2172 = vsel %vm1403, %v2164, 0.0
    %v2173 = vadd.f32 %v2171, %v2172
    %v2174 = vsel %vm1403, %v2165, 0.0
    %v2175 = vadd.f32 %v2173, %v2174
    %v2176 = vsel %vm1403, %v2166, 0.0
    %v2177 = vadd.f32 %v2175, %v2176
    %v2178 = vsel %vm1403, %v2167, 0.0
    %v2179 = vadd.f32 %v2177, %v2178
    %v2180 = vsel %vm1403, %v2168, 0.0
    %v2181 = vadd.f32 %v2179, %v2180
    %v2182 = vsel %vm1403, %v2169, 0.0
    %v2183 = vadd.f32 %v2181, %v2182
    %v2184 = vsel %vm1403, %v2170, 0.0
    %v2185 = vadd.f32 %v2183, %v2184
    %2186 = vadd.xlane.f32.xlu0 %v2185
    %v2187 = vpop.xlane.xlu0 %2186
    %v2188 = vrot.slane %v2187, 4
    %v2189 = vadd.f32 %v2187, %v2188
    %v2190 = vrot.slane %v2189, 2
    %v2191 = vadd.f32 %v2189, %v2190
    %v2192 = vrot.slane %v2191, 1
    %v2193 = vadd.f32 %v2191, %v2192
    %s2194 = vtos %v2193
    %vm2195 = vcmask 1040384
    %v2196 = vsel %vm2195, %v32, 0.0
    %2197 = vadd.xlane.f32.xlu0 %v2196
    %v2198 = vpop.xlane.xlu0 %2197
    %v2199 = vrot.slane %v2198, 4
    %v2200 = vadd.f32 %v2198, %v2199
    %v2201 = vrot.slane %v2200, 2
    %v2202 = vadd.f32 %v2200, %v2201
    %v2203 = vrot.slane %v2202, 1
    %v2204 = vadd.f32 %v2202, %v2203
    %s2205 = vtos %v2204
    %s2206 = sadd.f32 %s2194, %s2205
    %vm2207 = vcmask 1024
    %v2208 = vsel %vm2207, %v2162, 0.0
    %2209 = vadd.xlane.f32.xlu0 %v2208
    %v2210 = vpop.xlane.xlu0 %2209
    %v2211 = vrot.slane %v2210, 4
    %v2212 = vadd.f32 %v2210, %v2211
    %v2213 = vrot.slane %v2212, 2
    %v2214 = vadd.f32 %v2212, %v2213
    %v2215 = vrot.slane %v2214, 1
    %v2216 = vadd.f32 %v2214, %v2215
    %s2217 = vtos %v2216
    %s2218 = ssub.f32 %s2217, %s2206
    %v2219 = vrcp.pop 2.0
    %s2220 = vtos %v2219
    %s2221 = smul.f32 %s2218, %s2220
    %v2222 = vstv %s2221
    %vm2223 = vcmask 0
    %2224 = vst.msk [vmem:[#allocation2] sm:$0x1] %vm2223, %v2222
    // Predicated region
    $region14: #{ner_forward.1} parent=1 // pred_check
      _
    $region15: #{ner_forward.1} parent=1 // pred_check_branch
      %2226 = sbr.rel (0) target = $region17
    $region16: #{ner_forward.1} parent=1 // pred_region
      %s2228 = ssub.s32 16, 16
      %2229 = vsyncadd [#allocation3], %s2228
      %s2231 = sshll.u32 [#allocation2], 4
      %s2232 = int_to_ptr.vmem [resolvable:$true] %s2231
      %2234 = dma.vmem_to_hbm [thread:$0]  %s2232, 16, %s3, [#allocation3]
    $region17: #{ner_forward.1} parent=1 // pred_fallthru
      _
    // Predicated region
    $region18: #{ner_forward.1} parent=1 // pred_check
      _
    $region19: #{ner_forward.1} parent=1 // pred_check_branch
      %2236 = sbr.rel (0) target = $region21
    $region20: #{ner_forward.1} parent=1 // pred_region
      %2237 = dma.done [#allocation3], 16
    $region21: #{ner_forward.1} parent=1 // pred_fallthru
      _
    %2238 = vsyncpa [#allocation3], 1

</llo_original>
